<compile_context>
chip_gen: v7x
topology: tpu7x:2x2x1
jax: 0.10.0
libtpu: 0.0.40
codegen_flags: <defaults>
</compile_context>

<pallas_src>
import jax
import jax.numpy as jnp
from jax.experimental import pallas as pl
from jax.experimental.pallas import tpu as pltpu

# ---- hyperparameters (small but structurally identical to the module) ----
N_EMBD = 384       # n_embd (matches the module)
NUM_HEADS = 3
HEAD_SIZE = 128    # head_size (H * hs == n_embd, lane-aligned per head)
SEQ_LEN = 8        # T  (<= block_size; causal tril mask applied to [:T, :T])
BATCH = 2
NEG_INF = -1e30


def mha_kernel(x_ref, mask_ref, wqkv_ref, wproj_ref, bproj_ref, o_ref):
    """Single invocation: full multi-head causal attention for the whole batch
    (rows = B*T), plus the fused output projection, all in VMEM."""
    x = x_ref[...].astype(jnp.float32)            # (BT, C)
    bias = mask_ref[...]                          # (BT, BT) additive 0 / -1e30

    # One fused QKV projection across all heads (scale pre-folded into Wq).
    qkv = jnp.dot(x, wqkv_ref[...], preferred_element_type=jnp.float32)  # (BT, 3*H*hs)

    M = NUM_HEADS * HEAD_SIZE                     # == C
    heads = []
    for h in range(NUM_HEADS):                    # tiny static unroll; 128-aligned slices
        q = qkv[:, h * HEAD_SIZE:(h + 1) * HEAD_SIZE]              # (BT, hs), pre-scaled
        k = qkv[:, M + h * HEAD_SIZE:M + (h + 1) * HEAD_SIZE]      # (BT, hs)
        v = qkv[:, 2 * M + h * HEAD_SIZE:2 * M + (h + 1) * HEAD_SIZE]

        s = jnp.dot(q, k.T, preferred_element_type=jnp.float32) + bias   # (BT, BT)
        s = s - jnp.max(s, axis=-1, keepdims=True)
        p = jnp.exp(s)
        p = p * pl.reciprocal(jnp.sum(p, axis=-1, keepdims=True), approx=True)

        heads.append(jnp.dot(p, v, preferred_element_type=jnp.float32))  # (BT, hs)

    cat = jnp.concatenate(heads, axis=-1)                                 # (BT, H*hs)
    out = jnp.dot(cat, wproj_ref[...], preferred_element_type=jnp.float32)
    out = out + bproj_ref[...]                                            # broadcast (1, C)
    o_ref[...] = out.astype(o_ref.dtype)                                  # lane-dense store


def multi_head_attention(x, wq, wk, wv, wp, bp):
    """x: (B, T, C) f32.  wq/wk/wv: (H, C, hs).  wp: (H, hs, C).  bp: (1, C)."""
    B, T, C = x.shape
    H, _, hs = wq.shape
    M = H * hs
    scale = float(C) ** -0.5       # module scales by C**-0.5 with C = n_embd

    # Pack per-head weights into one fused QKV weight (done outside the kernel);
    # fold the attention scale into the Q columns.
    wq_cat = jnp.transpose(wq, (1, 0, 2)).reshape(C, M) * scale
    wk_cat = jnp.transpose(wk, (1, 0, 2)).reshape(C, M)
    wv_cat = jnp.transpose(wv, (1, 0, 2)).reshape(C, M)
    w_qkv = jnp.concatenate([wq_cat, wk_cat, wv_cat], axis=1)   # (C, 3*M)
    w_proj = wp.reshape(M, C)                                   # (H*hs, C)

    # Flatten batch into rows; block-diagonal causal additive mask handles both
    # batch separation and causality in a single (BT, BT) score matrix per head.
    x2d = x.reshape(B * T, C)
    rows = jnp.arange(B * T)
    same_batch = (rows[:, None] // T) == (rows[None, :] // T)
    causal = (rows[:, None] % T) >= (rows[None, :] % T)
    mask = jnp.where(same_batch & causal, 0.0, NEG_INF).astype(jnp.float32)

    out2d = pl.pallas_call(
        mha_kernel,
        out_shape=jax.ShapeDtypeStruct((B * T, C), x.dtype),
        grid_spec=pltpu.PrefetchScalarGridSpec(
            num_scalar_prefetch=0,
            grid=(1,),                                   # single step: all work fused
            in_specs=[
                pl.BlockSpec((B * T, C), lambda i: (0, 0)),        # x (flattened)
                pl.BlockSpec((B * T, B * T), lambda i: (0, 0)),    # additive mask
                pl.BlockSpec((C, 3 * M), lambda i: (0, 0)),        # fused QKV weight
                pl.BlockSpec((M, C), lambda i: (0, 0)),            # output projection
                pl.BlockSpec((1, C), lambda i: (0, 0)),            # proj bias
            ],
            out_specs=pl.BlockSpec((B * T, C), lambda i: (0, 0)),
        ),
        compiler_params=pltpu.CompilerParams(dimension_semantics=("arbitrary",)),
    )(x2d, mask, w_qkv, w_proj, bp)
    return out2d.reshape(B, T, C)


def reference(x, wq, wk, wv, wp, bp):
    """Pure-JAX reference mirroring the PyTorch forward (eval mode)."""
    B, T, C = x.shape
    scale = float(C) ** -0.5
    tril = jnp.tril(jnp.ones((T, T), dtype=bool))
    outs = []
    for h in range(NUM_HEADS):
        q = x @ wq[h]
        k = x @ wk[h]
        v = x @ wv[h]
        wei = (q @ jnp.swapaxes(k, -1, -2)) * scale
        wei = jnp.where(tril, wei, -jnp.inf)
        wei = jax.nn.softmax(wei, axis=-1)
        outs.append(wei @ v)
    cat = jnp.concatenate(outs, axis=-1)                    # (B, T, H*hs)
    wp_cat = wp.reshape(NUM_HEADS * HEAD_SIZE, C)           # (H*hs, C)
    return cat @ wp_cat + bp[0]


if __name__ == "__main__":
    key = jax.random.PRNGKey(0)
    kx, kq, kk, kv, kp, kb = jax.random.split(key, 6)

    x = jax.random.normal(kx, (BATCH, SEQ_LEN, N_EMBD), dtype=jnp.float32)

    # deterministic parameter init (nn.Linear-like scaling)
    s_qkv = 1.0 / (N_EMBD ** 0.5)
    s_p = 1.0 / ((NUM_HEADS * HEAD_SIZE) ** 0.5)
    wq = jax.random.uniform(kq, (NUM_HEADS, N_EMBD, HEAD_SIZE), jnp.float32, -s_qkv, s_qkv)
    wk = jax.random.uniform(kk, (NUM_HEADS, N_EMBD, HEAD_SIZE), jnp.float32, -s_qkv, s_qkv)
    wv = jax.random.uniform(kv, (NUM_HEADS, N_EMBD, HEAD_SIZE), jnp.float32, -s_qkv, s_qkv)
    wp = jax.random.uniform(kp, (NUM_HEADS, HEAD_SIZE, N_EMBD), jnp.float32, -s_p, s_p)
    bp = jax.random.uniform(kb, (1, N_EMBD), jnp.float32, -s_p, s_p)

    out = multi_head_attention(x, wq, wk, wv, wp, bp)
    out = jax.block_until_ready(out)

    ref = reference(x, wq, wk, wv, wp, bp)
    assert out.shape == (BATCH, SEQ_LEN, N_EMBD)
    # approx=True softmax reciprocal -> slightly looser tolerance than exact math
    assert jnp.allclose(out, ref, atol=1e-3, rtol=1e-3), "mismatch vs. JAX reference"

    print("KERNEL_OK")
</pallas_src>

<mosaic_0001>
module attributes {stable_mosaic.version = 11 : i64} {
  func.func @mha_kernel(%arg0: i32, %arg1: memref<16x384xf32, #tpu.memory_space<vmem>>, %arg2: memref<16x16xf32, #tpu.memory_space<vmem>>, %arg3: memref<384x1152xf32, #tpu.memory_space<vmem>>, %arg4: memref<384x384xf32, #tpu.memory_space<vmem>>, %arg5: memref<1x384xf32, #tpu.memory_space<vmem>>, %arg6: memref<16x384xf32, #tpu.memory_space<vmem>>) attributes {dimension_semantics = [#tpu.dimension_semantics<arbitrary>], iteration_bounds = array<i64: 1>, scalar_prefetch = 0 : i64, scratch_operands = 0 : i64, tpu.core_type = #tpu.core_type<tc>, window_params = [{pipeline_mode = #tpu.pipeline_mode<synchronous>, transform_indices = @transform_0, window_bounds = array<i64: 16, 384>}, {pipeline_mode = #tpu.pipeline_mode<synchronous>, transform_indices = @transform_1, window_bounds = array<i64: 16, 16>}, {pipeline_mode = #tpu.pipeline_mode<synchronous>, transform_indices = @transform_2, window_bounds = array<i64: 384, 1152>}, {pipeline_mode = #tpu.pipeline_mode<synchronous>, transform_indices = @transform_3, window_bounds = array<i64: 384, 384>}, {pipeline_mode = #tpu.pipeline_mode<synchronous>, transform_indices = @transform_4, window_bounds = array<i64: 1, 384>}, {pipeline_mode = #tpu.pipeline_mode<synchronous>, transform_indices = @transform_5, window_bounds = array<i64: 16, 384>}]} {
    %c0 = arith.constant 0 : index
    %c0_0 = arith.constant 0 : index
    %0 = vector.load %arg1[%c0, %c0_0] : memref<16x384xf32, #tpu.memory_space<vmem>>, vector<16x384xf32>
    %c0_1 = arith.constant 0 : index
    %c0_2 = arith.constant 0 : index
    %1 = vector.load %arg2[%c0_1, %c0_2] : memref<16x16xf32, #tpu.memory_space<vmem>>, vector<16x16xf32>
    %c0_3 = arith.constant 0 : index
    %c0_4 = arith.constant 0 : index
    %2 = vector.load %arg3[%c0_3, %c0_4] : memref<384x1152xf32, #tpu.memory_space<vmem>>, vector<384x1152xf32>
    %cst = arith.constant dense<0.000000e+00> : vector<16x1152xf32>
    %3 = tpu.matmul %0, %2, %cst {dimension_numbers = #tpu.dot_dimension_numbers<[1], [0], [0], [1], [0, 0, 1, 1], [], []>} : vector<16x384xf32>, vector<384x1152xf32>, vector<16x1152xf32> -> vector<16x1152xf32>
    %4 = vector.extract_strided_slice %3 {offsets = [0, 0], sizes = [16, 128], strides = [1, 1]} : vector<16x1152xf32> to vector<16x128xf32>
    %5 = vector.extract_strided_slice %3 {offsets = [0, 384], sizes = [16, 128], strides = [1, 1]} : vector<16x1152xf32> to vector<16x128xf32>
    %6 = vector.extract_strided_slice %3 {offsets = [0, 768], sizes = [16, 128], strides = [1, 1]} : vector<16x1152xf32> to vector<16x128xf32>
    %7 = tpu.transpose %5, [1, 0] : vector<16x128xf32> -> vector<128x16xf32>
    %cst_5 = arith.constant dense<0.000000e+00> : vector<16x16xf32>
    %8 = tpu.matmul %4, %7, %cst_5 {dimension_numbers = #tpu.dot_dimension_numbers<[1], [0], [0], [1], [0, 0, 1, 1], [], []>} : vector<16x128xf32>, vector<128x16xf32>, vector<16x16xf32> -> vector<16x16xf32>
    %9 = arith.addf %8, %1 : vector<16x16xf32>
    %cst_6 = arith.constant dense<0xFF800000> : vector<16xf32>
    %10 = vector.multi_reduction <maximumf>, %9, %cst_6 [1] : vector<16x16xf32> to vector<16xf32>
    %11 = vector.shape_cast %10 : vector<16xf32> to vector<16x1xf32>
    %12 = vector.broadcast %11 : vector<16x1xf32> to vector<16x16xf32>
    %13 = arith.subf %9, %12 : vector<16x16xf32>
    %14 = math.exp %13 : vector<16x16xf32>
    %cst_7 = arith.constant dense<0.000000e+00> : vector<16xf32>
    %15 = vector.multi_reduction <add>, %14, %cst_7 [1] : vector<16x16xf32> to vector<16xf32>
    %16 = vector.shape_cast %15 : vector<16xf32> to vector<16x1xf32>
    %17 = tpu.reciprocal %16 {approx = true} : vector<16x1xf32> -> vector<16x1xf32>
    %18 = vector.broadcast %17 : vector<16x1xf32> to vector<16x16xf32>
    %19 = arith.mulf %14, %18 : vector<16x16xf32>
    %cst_8 = arith.constant dense<0.000000e+00> : vector<16x128xf32>
    %20 = tpu.matmul %19, %6, %cst_8 {dimension_numbers = #tpu.dot_dimension_numbers<[1], [0], [0], [1], [0, 0, 1, 1], [], []>} : vector<16x16xf32>, vector<16x128xf32>, vector<16x128xf32> -> vector<16x128xf32>
    %21 = vector.extract_strided_slice %3 {offsets = [0, 128], sizes = [16, 128], strides = [1, 1]} : vector<16x1152xf32> to vector<16x128xf32>
    %22 = vector.extract_strided_slice %3 {offsets = [0, 512], sizes = [16, 128], strides = [1, 1]} : vector<16x1152xf32> to vector<16x128xf32>
    %23 = vector.extract_strided_slice %3 {offsets = [0, 896], sizes = [16, 128], strides = [1, 1]} : vector<16x1152xf32> to vector<16x128xf32>
    %24 = tpu.transpose %22, [1, 0] : vector<16x128xf32> -> vector<128x16xf32>
    %cst_9 = arith.constant dense<0.000000e+00> : vector<16x16xf32>
    %25 = tpu.matmul %21, %24, %cst_9 {dimension_numbers = #tpu.dot_dimension_numbers<[1], [0], [0], [1], [0, 0, 1, 1], [], []>} : vector<16x128xf32>, vector<128x16xf32>, vector<16x16xf32> -> vector<16x16xf32>
    %26 = arith.addf %25, %1 : vector<16x16xf32>
    %cst_10 = arith.constant dense<0xFF800000> : vector<16xf32>
    %27 = vector.multi_reduction <maximumf>, %26, %cst_10 [1] : vector<16x16xf32> to vector<16xf32>
    %28 = vector.shape_cast %27 : vector<16xf32> to vector<16x1xf32>
    %29 = vector.broadcast %28 : vector<16x1xf32> to vector<16x16xf32>
    %30 = arith.subf %26, %29 : vector<16x16xf32>
    %31 = math.exp %30 : vector<16x16xf32>
    %cst_11 = arith.constant dense<0.000000e+00> : vector<16xf32>
    %32 = vector.multi_reduction <add>, %31, %cst_11 [1] : vector<16x16xf32> to vector<16xf32>
    %33 = vector.shape_cast %32 : vector<16xf32> to vector<16x1xf32>
    %34 = tpu.reciprocal %33 {approx = true} : vector<16x1xf32> -> vector<16x1xf32>
    %35 = vector.broadcast %34 : vector<16x1xf32> to vector<16x16xf32>
    %36 = arith.mulf %31, %35 : vector<16x16xf32>
    %cst_12 = arith.constant dense<0.000000e+00> : vector<16x128xf32>
    %37 = tpu.matmul %36, %23, %cst_12 {dimension_numbers = #tpu.dot_dimension_numbers<[1], [0], [0], [1], [0, 0, 1, 1], [], []>} : vector<16x16xf32>, vector<16x128xf32>, vector<16x128xf32> -> vector<16x128xf32>
    %38 = vector.extract_strided_slice %3 {offsets = [0, 256], sizes = [16, 128], strides = [1, 1]} : vector<16x1152xf32> to vector<16x128xf32>
    %39 = vector.extract_strided_slice %3 {offsets = [0, 640], sizes = [16, 128], strides = [1, 1]} : vector<16x1152xf32> to vector<16x128xf32>
    %40 = vector.extract_strided_slice %3 {offsets = [0, 1024], sizes = [16, 128], strides = [1, 1]} : vector<16x1152xf32> to vector<16x128xf32>
    %41 = tpu.transpose %39, [1, 0] : vector<16x128xf32> -> vector<128x16xf32>
    %cst_13 = arith.constant dense<0.000000e+00> : vector<16x16xf32>
    %42 = tpu.matmul %38, %41, %cst_13 {dimension_numbers = #tpu.dot_dimension_numbers<[1], [0], [0], [1], [0, 0, 1, 1], [], []>} : vector<16x128xf32>, vector<128x16xf32>, vector<16x16xf32> -> vector<16x16xf32>
    %43 = arith.addf %42, %1 : vector<16x16xf32>
    %cst_14 = arith.constant dense<0xFF800000> : vector<16xf32>
    %44 = vector.multi_reduction <maximumf>, %43, %cst_14 [1] : vector<16x16xf32> to vector<16xf32>
    %45 = vector.shape_cast %44 : vector<16xf32> to vector<16x1xf32>
    %46 = vector.broadcast %45 : vector<16x1xf32> to vector<16x16xf32>
    %47 = arith.subf %43, %46 : vector<16x16xf32>
    %48 = math.exp %47 : vector<16x16xf32>
    %cst_15 = arith.constant dense<0.000000e+00> : vector<16xf32>
    %49 = vector.multi_reduction <add>, %48, %cst_15 [1] : vector<16x16xf32> to vector<16xf32>
    %50 = vector.shape_cast %49 : vector<16xf32> to vector<16x1xf32>
    %51 = tpu.reciprocal %50 {approx = true} : vector<16x1xf32> -> vector<16x1xf32>
    %52 = vector.broadcast %51 : vector<16x1xf32> to vector<16x16xf32>
    %53 = arith.mulf %48, %52 : vector<16x16xf32>
    %cst_16 = arith.constant dense<0.000000e+00> : vector<16x128xf32>
    %54 = tpu.matmul %53, %40, %cst_16 {dimension_numbers = #tpu.dot_dimension_numbers<[1], [0], [0], [1], [0, 0, 1, 1], [], []>} : vector<16x16xf32>, vector<16x128xf32>, vector<16x128xf32> -> vector<16x128xf32>
    %55 = tpu.concatenate %20, %37, %54 in 1 : vector<16x128xf32>, vector<16x128xf32>, vector<16x128xf32> -> vector<16x384xf32>
    %c0_17 = arith.constant 0 : index
    %c0_18 = arith.constant 0 : index
    %56 = vector.load %arg4[%c0_17, %c0_18] : memref<384x384xf32, #tpu.memory_space<vmem>>, vector<384x384xf32>
    %cst_19 = arith.constant dense<0.000000e+00> : vector<16x384xf32>
    %57 = tpu.matmul %55, %56, %cst_19 {dimension_numbers = #tpu.dot_dimension_numbers<[1], [0], [0], [1], [0, 0, 1, 1], [], []>} : vector<16x384xf32>, vector<384x384xf32>, vector<16x384xf32> -> vector<16x384xf32>
    %c0_20 = arith.constant 0 : index
    %c0_21 = arith.constant 0 : index
    %58 = vector.load %arg5[%c0_20, %c0_21] : memref<1x384xf32, #tpu.memory_space<vmem>>, vector<1x384xf32>
    %59 = vector.broadcast %58 : vector<1x384xf32> to vector<16x384xf32>
    %60 = arith.addf %57, %59 : vector<16x384xf32>
    %c0_22 = arith.constant 0 : index
    %c0_23 = arith.constant 0 : index
    %61 = vector.load %arg6[%c0_22, %c0_23] : memref<16x384xf32, #tpu.memory_space<vmem>>, vector<16x384xf32>
    tpu.vector_store %arg6[%c0_22, %c0_23], %60 {strides = array<i32>} : memref<16x384xf32, #tpu.memory_space<vmem>>, vector<16x384xf32>,
    return
  }
  func.func @transform_0(%arg0: i32) -> (i32, i32) {
    %c0_i32 = arith.constant 0 : i32
    %c0_i32_0 = arith.constant 0 : i32
    %c0_i32_1 = arith.constant 0 : i32
    return %c0_i32, %c0_i32_0 : i32, i32
  }
  func.func @transform_1(%arg0: i32) -> (i32, i32) {
    %c0_i32 = arith.constant 0 : i32
    %c0_i32_0 = arith.constant 0 : i32
    %c0_i32_1 = arith.constant 0 : i32
    return %c0_i32, %c0_i32_0 : i32, i32
  }
  func.func @transform_2(%arg0: i32) -> (i32, i32) {
    %c0_i32 = arith.constant 0 : i32
    %c0_i32_0 = arith.constant 0 : i32
    %c0_i32_1 = arith.constant 0 : i32
    return %c0_i32, %c0_i32_0 : i32, i32
  }
  func.func @transform_3(%arg0: i32) -> (i32, i32) {
    %c0_i32 = arith.constant 0 : i32
    %c0_i32_0 = arith.constant 0 : i32
    %c0_i32_1 = arith.constant 0 : i32
    return %c0_i32, %c0_i32_0 : i32, i32
  }
  func.func @transform_4(%arg0: i32) -> (i32, i32) {
    %c0_i32 = arith.constant 0 : i32
    %c0_i32_0 = arith.constant 0 : i32
    %c0_i32_1 = arith.constant 0 : i32
    return %c0_i32, %c0_i32_0 : i32, i32
  }
  func.func @transform_5(%arg0: i32) -> (i32, i32) {
    %c0_i32 = arith.constant 0 : i32
    %c0_i32_0 = arith.constant 0 : i32
    %c0_i32_1 = arith.constant 0 : i32
    return %c0_i32, %c0_i32_0 : i32, i32
  }
}

</mosaic_0001>

<llo_original>
// kernel: tpu_custom_call.1
$region0: #{tpu_custom_call.1}
  #allocation0 [shape = 'u32[]', space=smem, size = 0x4, offset = 0x4, fixed_abs, tag = 'smem constant byte address 0x4 - core index']
  #allocation1 [shape = 'u32[144,128]{1,0:T(1,128)}', space=vmem, size = 0x12000, scoped, tag = 'internal scratch']
  %s0 = inlined_call_operand.hbm [shape: f32[16,384], index: 0, kind: input, shape index: {}]
  %s1 = inlined_call_operand.hbm [shape: f32[16,16], index: 1, kind: input, shape index: {}]
  %s2 = inlined_call_operand.hbm [shape: f32[384,1152], index: 2, kind: input, shape index: {}]
  %s3 = inlined_call_operand.hbm [shape: f32[384,384], index: 3, kind: input, shape index: {}]
  %s4 = inlined_call_operand.hbm [shape: f32[1,384], index: 4, kind: input, shape index: {}]
  %s5 = inlined_call_operand.hbm [shape: f32[16,384], index: 5, kind: output, shape index: {}]
  %s6 = sld [smem:[#allocation0]]
  $region50: #{tpu_custom_call.1} parent=0
    _
  %s8 = ssub.s32 1, %s6
  %s9 = scalar_select 0, %s8, %s6
  $region1: #{tpu_custom_call.1} parent=0
    #allocation2 [shape = 'u8[24576]{0}', space=vmem, size = 0x6000, scoped, tag = 'input window, operand 0, single buffered']
    #allocation3 [shape = 's32[1]{0}', space=sflag, size = 0x4, scoped, tag = 'scoped memory for tpu_custom_call.1']
    #allocation4 [shape = 's32[1]{0}', space=sflag, size = 0x4, scoped, tag = 'scoped memory for tpu_custom_call.1']
    #allocation5 [shape = 'u8[8192]{0}', space=vmem, size = 0x2000, scoped, tag = 'input window, operand 1, single buffered']
    #allocation6 [shape = 's32[1]{0}', space=sflag, size = 0x4, scoped, tag = 'scoped memory for tpu_custom_call.1']
    #allocation7 [shape = 'u8[1769472]{0}', space=vmem, size = 0x1b0000, scoped, tag = 'input window, operand 2, single buffered']
    #allocation8 [shape = 'u8[589824]{0}', space=vmem, size = 0x90000, scoped, tag = 'input window, operand 3, single buffered']
    #allocation9 [shape = 's32[1]{0}', space=sflag, size = 0x4, scoped, tag = 'scoped memory for tpu_custom_call.1']
    #allocation10 [shape = 'u8[1536]{0}', space=vmem, size = 0x800, scoped, tag = 'input window, operand 4, single buffered']
    #allocation11 [shape = 'u8[24576]{0}', space=vmem, size = 0x6000, scoped, tag = 'output window, operand 0, single buffered']
    %10 = vsyncpa [#allocation3], 0
    %11 = vsyncpa [#allocation6], 0
    %12 = vsyncpa [#allocation9], 0
    %13 = vsyncpa [#allocation4], 0
    // Predicated region
    $region2: #{tpu_custom_call.1} parent=1 // pred_check
      _
    $region3: #{tpu_custom_call.1} parent=1 // pred_check_branch
      %15 = sbr.rel (0) target = $region5
    $region4: #{tpu_custom_call.1} parent=1 // pred_region
      %s17 = ssub.s32 768, 768
      %18 = vsyncadd [#allocation3], %s17
      %s19 = sshll.u32 [#allocation2], 4
      %s20 = int_to_ptr.vmem [resolvable:$true] %s19
      %25 = dma.hbm_to_vmem [thread:$0]  %s0, 768, %s20, [#allocation3], 384, 384, 24
    $region5: #{tpu_custom_call.1} parent=1 // pred_fallthru
      _
    // Predicated region
    $region6: #{tpu_custom_call.1} parent=1 // pred_check
      _
    $region7: #{tpu_custom_call.1} parent=1 // pred_check_branch
      %27 = sbr.rel (0) target = $region9
    $region8: #{tpu_custom_call.1} parent=1 // pred_region
      %s29 = ssub.s32 256, 256
      %30 = vsyncadd [#allocation6], %s29
      %s31 = sshll.u32 [#allocation5], 4
      %s32 = int_to_ptr.vmem [resolvable:$true] %s31
      %37 = dma.hbm_to_vmem [thread:$0]  %s1, 256, %s32, [#allocation6], 128, 128, 8
    $region9: #{tpu_custom_call.1} parent=1 // pred_fallthru
      _
    // Predicated region
    $region10: #{tpu_custom_call.1} parent=1 // pred_check
      _
    $region11: #{tpu_custom_call.1} parent=1 // pred_check_branch
      %39 = sbr.rel (0) target = $region13
    $region12: #{tpu_custom_call.1} parent=1 // pred_region
      %s41 = ssub.s32 55296, 55296
      %42 = vsyncadd [#allocation6], %s41
      %s43 = sshll.u32 [#allocation7], 4
      %s44 = int_to_ptr.vmem [resolvable:$true] %s43
      %49 = dma.hbm_to_vmem [thread:$0]  %s2, 55296, %s44, [#allocation6], 1152, 1152, 72
    $region13: #{tpu_custom_call.1} parent=1 // pred_fallthru
      _
    // Predicated region
    $region14: #{tpu_custom_call.1} parent=1 // pred_check
      _
    $region15: #{tpu_custom_call.1} parent=1 // pred_check_branch
      %51 = sbr.rel (0) target = $region17
    $region16: #{tpu_custom_call.1} parent=1 // pred_region
      %s53 = ssub.s32 18432, 18432
      %54 = vsyncadd [#allocation9], %s53
      %s55 = sshll.u32 [#allocation8], 4
      %s56 = int_to_ptr.vmem [resolvable:$true] %s55
      %61 = dma.hbm_to_vmem [thread:$0]  %s3, 18432, %s56, [#allocation9], 384, 384, 24
    $region17: #{tpu_custom_call.1} parent=1 // pred_fallthru
      _
    // Predicated region
    $region18: #{tpu_custom_call.1} parent=1 // pred_check
      _
    $region19: #{tpu_custom_call.1} parent=1 // pred_check_branch
      %63 = sbr.rel (0) target = $region21
    $region20: #{tpu_custom_call.1} parent=1 // pred_region
      %s65 = ssub.s32 48, 48
      %66 = vsyncadd [#allocation9], %s65
      %s68 = sshll.u32 [#allocation10], 4
      %s69 = int_to_ptr.vmem [resolvable:$true] %s68
      %71 = dma.hbm_to_vmem [thread:$0]  %s4, 48, %s69, [#allocation9]
    $region21: #{tpu_custom_call.1} parent=1 // pred_fallthru
      _
    // Predicated region
    $region22: #{tpu_custom_call.1} parent=1 // pred_check
      _
    $region23: #{tpu_custom_call.1} parent=1 // pred_check_branch
      %73 = sbr.rel (0) target = $region25
    $region24: #{tpu_custom_call.1} parent=1 // pred_region
      %74 = dma.done [#allocation3], 768
    $region25: #{tpu_custom_call.1} parent=1 // pred_fallthru
      _
    // Predicated region
    $region26: #{tpu_custom_call.1} parent=1 // pred_check
      _
    $region27: #{tpu_custom_call.1} parent=1 // pred_check_branch
      %76 = sbr.rel (0) target = $region29
    $region28: #{tpu_custom_call.1} parent=1 // pred_region
      %77 = dma.done [#allocation6], 256
    $region29: #{tpu_custom_call.1} parent=1 // pred_fallthru
      _
    // Predicated region
    $region30: #{tpu_custom_call.1} parent=1 // pred_check
      _
    $region31: #{tpu_custom_call.1} parent=1 // pred_check_branch
      %79 = sbr.rel (0) target = $region33
    $region32: #{tpu_custom_call.1} parent=1 // pred_region
      %80 = dma.done [#allocation6], 55296
    $region33: #{tpu_custom_call.1} parent=1 // pred_fallthru
      _
    // Predicated region
    $region34: #{tpu_custom_call.1} parent=1 // pred_check
      _
    $region35: #{tpu_custom_call.1} parent=1 // pred_check_branch
      %82 = sbr.rel (0) target = $region37
    $region36: #{tpu_custom_call.1} parent=1 // pred_region
      %83 = dma.done [#allocation9], 18432
    $region37: #{tpu_custom_call.1} parent=1 // pred_fallthru
      _
    // Predicated region
    $region38: #{tpu_custom_call.1} parent=1 // pred_check
      _
    $region39: #{tpu_custom_call.1} parent=1 // pred_check_branch
      %85 = sbr.rel (0) target = $region41
    $region40: #{tpu_custom_call.1} parent=1 // pred_region
      %86 = dma.done [#allocation9], 48
    $region41: #{tpu_custom_call.1} parent=1 // pred_fallthru
      _
    %v87 = vld [vmem:[#allocation2] sm:$0xff]
    %v88 = vld [vmem:[#allocation2 + $0x8] sm:$0xff]
    %v89 = vld [vmem:[#allocation2 + $0x10] sm:$0xff]
    %v90 = vld [vmem:[#allocation2 + $0x18] sm:$0xff]
    %v91 = vld [vmem:[#allocation2 + $0x20] sm:$0xff]
    %v92 = vld [vmem:[#allocation2 + $0x28] sm:$0xff]
    %v93 = vld [vmem:[#allocation5] sm:$0xff]
    %v94 = vld [vmem:[#allocation5 + $0x8] sm:$0xff]
    %v95 = vld [vmem:[#allocation7] sm:$0xff]
    %v96 = vld [vmem:[#allocation7 + $0x8] sm:$0xff]
    %v97 = vld [vmem:[#allocation7 + $0x10] sm:$0xff]
    %v98 = vld [vmem:[#allocation7 + $0x18] sm:$0xff]
    %v99 = vld [vmem:[#allocation7 + $0x20] sm:$0xff]
    %v100 = vld [vmem:[#allocation7 + $0x28] sm:$0xff]
    %v101 = vld [vmem:[#allocation7 + $0x30] sm:$0xff]
    %v102 = vld [vmem:[#allocation7 + $0x38] sm:$0xff]
    %v103 = vld [vmem:[#allocation7 + $0x40] sm:$0xff]
    %v104 = vld [vmem:[#allocation7 + $0x48] sm:$0xff]
    %v105 = vld [vmem:[#allocation7 + $0x50] sm:$0xff]
    %v106 = vld [vmem:[#allocation7 + $0x58] sm:$0xff]
    %v107 = vld [vmem:[#allocation7 + $0x60] sm:$0xff]
    %v108 = vld [vmem:[#allocation7 + $0x68] sm:$0xff]
    %v109 = vld [vmem:[#allocation7 + $0x70] sm:$0xff]
    %v110 = vld [vmem:[#allocation7 + $0x78] sm:$0xff]
    %v111 = vld [vmem:[#allocation7 + $0x80] sm:$0xff]
    %v112 = vld [vmem:[#allocation7 + $0x88] sm:$0xff]
    %v113 = vld [vmem:[#allocation7 + $0x90] sm:$0xff]
    %v114 = vld [vmem:[#allocation7 + $0x98] sm:$0xff]
    %v115 = vld [vmem:[#allocation7 + $0xa0] sm:$0xff]
    %v116 = vld [vmem:[#allocation7 + $0xa8] sm:$0xff]
    %v117 = vld [vmem:[#allocation7 + $0xb0] sm:$0xff]
    %v118 = vld [vmem:[#allocation7 + $0xb8] sm:$0xff]
    %v119 = vld [vmem:[#allocation7 + $0xc0] sm:$0xff]
    %v120 = vld [vmem:[#allocation7 + $0xc8] sm:$0xff]
    %v121 = vld [vmem:[#allocation7 + $0xd0] sm:$0xff]
    %v122 = vld [vmem:[#allocation7 + $0xd8] sm:$0xff]
    %v123 = vld [vmem:[#allocation7 + $0xe0] sm:$0xff]
    %v124 = vld [vmem:[#allocation7 + $0xe8] sm:$0xff]
    %v125 = vld [vmem:[#allocation7 + $0xf0] sm:$0xff]
    %v126 = vld [vmem:[#allocation7 + $0xf8] sm:$0xff]
    %v127 = vld [vmem:[#allocation7 + $0x100] sm:$0xff]
    %v128 = vld [vmem:[#allocation7 + $0x108] sm:$0xff]
    %v129 = vld [vmem:[#allocation7 + $0x110] sm:$0xff]
    %v130 = vld [vmem:[#allocation7 + $0x118] sm:$0xff]
    %v131 = vld [vmem:[#allocation7 + $0x120] sm:$0xff]
    %v132 = vld [vmem:[#allocation7 + $0x128] sm:$0xff]
    %v133 = vld [vmem:[#allocation7 + $0x130] sm:$0xff]
    %v134 = vld [vmem:[#allocation7 + $0x138] sm:$0xff]
    %v135 = vld [vmem:[#allocation7 + $0x140] sm:$0xff]
    %v136 = vld [vmem:[#allocation7 + $0x148] sm:$0xff]
    %v137 = vld [vmem:[#allocation7 + $0x150] sm:$0xff]
    %v138 = vld [vmem:[#allocation7 + $0x158] sm:$0xff]
    %v139 = vld [vmem:[#allocation7 + $0x160] sm:$0xff]
    %v140 = vld [vmem:[#allocation7 + $0x168] sm:$0xff]
    %v141 = vld [vmem:[#allocation7 + $0x170] sm:$0xff]
    %v142 = vld [vmem:[#allocation7 + $0x178] sm:$0xff]
    %v143 = vld [vmem:[#allocation7 + $0x180] sm:$0xff]
    %v144 = vld [vmem:[#allocation7 + $0x188] sm:$0xff]
    %v145 = vld [vmem:[#allocation7 + $0x190] sm:$0xff]
    %v146 = vld [vmem:[#allocation7 + $0x198] sm:$0xff]
    %v147 = vld [vmem:[#allocation7 + $0x1a0] sm:$0xff]
    %v148 = vld [vmem:[#allocation7 + $0x1a8] sm:$0xff]
    %v149 = vld [vmem:[#allocation7 + $0x1b0] sm:$0xff]
    %v150 = vld [vmem:[#allocation7 + $0x1b8] sm:$0xff]
    %v151 = vld [vmem:[#allocation7 + $0x1c0] sm:$0xff]
    %v152 = vld [vmem:[#allocation7 + $0x1c8] sm:$0xff]
    %v153 = vld [vmem:[#allocation7 + $0x1d0] sm:$0xff]
    %v154 = vld [vmem:[#allocation7 + $0x1d8] sm:$0xff]
    %v155 = vld [vmem:[#allocation7 + $0x1e0] sm:$0xff]
    %v156 = vld [vmem:[#allocation7 + $0x1e8] sm:$0xff]
    %v157 = vld [vmem:[#allocation7 + $0x1f0] sm:$0xff]
    %v158 = vld [vmem:[#allocation7 + $0x1f8] sm:$0xff]
    %v159 = vld [vmem:[#allocation7 + $0x200] sm:$0xff]
    %v160 = vld [vmem:[#allocation7 + $0x208] sm:$0xff]
    %v161 = vld [vmem:[#allocation7 + $0x210] sm:$0xff]
    %v162 = vld [vmem:[#allocation7 + $0x218] sm:$0xff]
    %v163 = vld [vmem:[#allocation7 + $0x220] sm:$0xff]
    %v164 = vld [vmem:[#allocation7 + $0x228] sm:$0xff]
    %v165 = vld [vmem:[#allocation7 + $0x230] sm:$0xff]
    %v166 = vld [vmem:[#allocation7 + $0x238] sm:$0xff]
    %v167 = vld [vmem:[#allocation7 + $0x240] sm:$0xff]
    %v168 = vld [vmem:[#allocation7 + $0x248] sm:$0xff]
    %v169 = vld [vmem:[#allocation7 + $0x250] sm:$0xff]
    %v170 = vld [vmem:[#allocation7 + $0x258] sm:$0xff]
    %v171 = vld [vmem:[#allocation7 + $0x260] sm:$0xff]
    %v172 = vld [vmem:[#allocation7 + $0x268] sm:$0xff]
    %v173 = vld [vmem:[#allocation7 + $0x270] sm:$0xff]
    %v174 = vld [vmem:[#allocation7 + $0x278] sm:$0xff]
    %v175 = vld [vmem:[#allocation7 + $0x280] sm:$0xff]
    %v176 = vld [vmem:[#allocation7 + $0x288] sm:$0xff]
    %v177 = vld [vmem:[#allocation7 + $0x290] sm:$0xff]
    %v178 = vld [vmem:[#allocation7 + $0x298] sm:$0xff]
    %v179 = vld [vmem:[#allocation7 + $0x2a0] sm:$0xff]
    %v180 = vld [vmem:[#allocation7 + $0x2a8] sm:$0xff]
    %v181 = vld [vmem:[#allocation7 + $0x2b0] sm:$0xff]
    %v182 = vld [vmem:[#allocation7 + $0x2b8] sm:$0xff]
    %v183 = vld [vmem:[#allocation7 + $0x2c0] sm:$0xff]
    %v184 = vld [vmem:[#allocation7 + $0x2c8] sm:$0xff]
    %v185 = vld [vmem:[#allocation7 + $0x2d0] sm:$0xff]
    %v186 = vld [vmem:[#allocation7 + $0x2d8] sm:$0xff]
    %v187 = vld [vmem:[#allocation7 + $0x2e0] sm:$0xff]
    %v188 = vld [vmem:[#allocation7 + $0x2e8] sm:$0xff]
    %v189 = vld [vmem:[#allocation7 + $0x2f0] sm:$0xff]
    %v190 = vld [vmem:[#allocation7 + $0x2f8] sm:$0xff]
    %v191 = vld [vmem:[#allocation7 + $0x300] sm:$0xff]
    %v192 = vld [vmem:[#allocation7 + $0x308] sm:$0xff]
    %v193 = vld [vmem:[#allocation7 + $0x310] sm:$0xff]
    %v194 = vld [vmem:[#allocation7 + $0x318] sm:$0xff]
    %v195 = vld [vmem:[#allocation7 + $0x320] sm:$0xff]
    %v196 = vld [vmem:[#allocation7 + $0x328] sm:$0xff]
    %v197 = vld [vmem:[#allocation7 + $0x330] sm:$0xff]
    %v198 = vld [vmem:[#allocation7 + $0x338] sm:$0xff]
    %v199 = vld [vmem:[#allocation7 + $0x340] sm:$0xff]
    %v200 = vld [vmem:[#allocation7 + $0x348] sm:$0xff]
    %v201 = vld [vmem:[#allocation7 + $0x350] sm:$0xff]
    %v202 = vld [vmem:[#allocation7 + $0x358] sm:$0xff]
    %v203 = vld [vmem:[#allocation7 + $0x360] sm:$0xff]
    %v204 = vld [vmem:[#allocation7 + $0x368] sm:$0xff]
    %v205 = vld [vmem:[#allocation7 + $0x370] sm:$0xff]
    %v206 = vld [vmem:[#allocation7 + $0x378] sm:$0xff]
    %v207 = vld [vmem:[#allocation7 + $0x380] sm:$0xff]
    %v208 = vld [vmem:[#allocation7 + $0x388] sm:$0xff]
    %v209 = vld [vmem:[#allocation7 + $0x390] sm:$0xff]
    %v210 = vld [vmem:[#allocation7 + $0x398] sm:$0xff]
    %v211 = vld [vmem:[#allocation7 + $0x3a0] sm:$0xff]
    %v212 = vld [vmem:[#allocation7 + $0x3a8] sm:$0xff]
    %v213 = vld [vmem:[#allocation7 + $0x3b0] sm:$0xff]
    %v214 = vld [vmem:[#allocation7 + $0x3b8] sm:$0xff]
    %v215 = vld [vmem:[#allocation7 + $0x3c0] sm:$0xff]
    %v216 = vld [vmem:[#allocation7 + $0x3c8] sm:$0xff]
    %v217 = vld [vmem:[#allocation7 + $0x3d0] sm:$0xff]
    %v218 = vld [vmem:[#allocation7 + $0x3d8] sm:$0xff]
    %v219 = vld [vmem:[#allocation7 + $0x3e0] sm:$0xff]
    %v220 = vld [vmem:[#allocation7 + $0x3e8] sm:$0xff]
    %v221 = vld [vmem:[#allocation7 + $0x3f0] sm:$0xff]
    %v222 = vld [vmem:[#allocation7 + $0x3f8] sm:$0xff]
    %v223 = vld [vmem:[#allocation7 + $0x400] sm:$0xff]
    %v224 = vld [vmem:[#allocation7 + $0x408] sm:$0xff]
    %v225 = vld [vmem:[#allocation7 + $0x410] sm:$0xff]
    %v226 = vld [vmem:[#allocation7 + $0x418] sm:$0xff]
    %v227 = vld [vmem:[#allocation7 + $0x420] sm:$0xff]
    %v228 = vld [vmem:[#allocation7 + $0x428] sm:$0xff]
    %v229 = vld [vmem:[#allocation7 + $0x430] sm:$0xff]
    %v230 = vld [vmem:[#allocation7 + $0x438] sm:$0xff]
    %v231 = vld [vmem:[#allocation7 + $0x440] sm:$0xff]
    %v232 = vld [vmem:[#allocation7 + $0x448] sm:$0xff]
    %v233 = vld [vmem:[#allocation7 + $0x450] sm:$0xff]
    %v234 = vld [vmem:[#allocation7 + $0x458] sm:$0xff]
    %v235 = vld [vmem:[#allocation7 + $0x460] sm:$0xff]
    %v236 = vld [vmem:[#allocation7 + $0x468] sm:$0xff]
    %v237 = vld [vmem:[#allocation7 + $0x470] sm:$0xff]
    %v238 = vld [vmem:[#allocation7 + $0x478] sm:$0xff]
    %v239 = vld [vmem:[#allocation7 + $0x480] sm:$0xff]
    %v240 = vld [vmem:[#allocation7 + $0x488] sm:$0xff]
    %v241 = vld [vmem:[#allocation7 + $0x490] sm:$0xff]
    %v242 = vld [vmem:[#allocation7 + $0x498] sm:$0xff]
    %v243 = vld [vmem:[#allocation7 + $0x4a0] sm:$0xff]
    %v244 = vld [vmem:[#allocation7 + $0x4a8] sm:$0xff]
    %v245 = vld [vmem:[#allocation7 + $0x4b0] sm:$0xff]
    %v246 = vld [vmem:[#allocation7 + $0x4b8] sm:$0xff]
    %v247 = vld [vmem:[#allocation7 + $0x4c0] sm:$0xff]
    %v248 = vld [vmem:[#allocation7 + $0x4c8] sm:$0xff]
    %v249 = vld [vmem:[#allocation7 + $0x4d0] sm:$0xff]
    %v250 = vld [vmem:[#allocation7 + $0x4d8] sm:$0xff]
    %v251 = vld [vmem:[#allocation7 + $0x4e0] sm:$0xff]
    %v252 = vld [vmem:[#allocation7 + $0x4e8] sm:$0xff]
    %v253 = vld [vmem:[#allocation7 + $0x4f0] sm:$0xff]
    %v254 = vld [vmem:[#allocation7 + $0x4f8] sm:$0xff]
    %v255 = vld [vmem:[#allocation7 + $0x500] sm:$0xff]
    %v256 = vld [vmem:[#allocation7 + $0x508] sm:$0xff]
    %v257 = vld [vmem:[#allocation7 + $0x510] sm:$0xff]
    %v258 = vld [vmem:[#allocation7 + $0x518] sm:$0xff]
    %v259 = vld [vmem:[#allocation7 + $0x520] sm:$0xff]
    %v260 = vld [vmem:[#allocation7 + $0x528] sm:$0xff]
    %v261 = vld [vmem:[#allocation7 + $0x530] sm:$0xff]
    %v262 = vld [vmem:[#allocation7 + $0x538] sm:$0xff]
    %v263 = vld [vmem:[#allocation7 + $0x540] sm:$0xff]
    %v264 = vld [vmem:[#allocation7 + $0x548] sm:$0xff]
    %v265 = vld [vmem:[#allocation7 + $0x550] sm:$0xff]
    %v266 = vld [vmem:[#allocation7 + $0x558] sm:$0xff]
    %v267 = vld [vmem:[#allocation7 + $0x560] sm:$0xff]
    %v268 = vld [vmem:[#allocation7 + $0x568] sm:$0xff]
    %v269 = vld [vmem:[#allocation7 + $0x570] sm:$0xff]
    %v270 = vld [vmem:[#allocation7 + $0x578] sm:$0xff]
    %v271 = vld [vmem:[#allocation7 + $0x580] sm:$0xff]
    %v272 = vld [vmem:[#allocation7 + $0x588] sm:$0xff]
    %v273 = vld [vmem:[#allocation7 + $0x590] sm:$0xff]
    %v274 = vld [vmem:[#allocation7 + $0x598] sm:$0xff]
    %v275 = vld [vmem:[#allocation7 + $0x5a0] sm:$0xff]
    %v276 = vld [vmem:[#allocation7 + $0x5a8] sm:$0xff]
    %v277 = vld [vmem:[#allocation7 + $0x5b0] sm:$0xff]
    %v278 = vld [vmem:[#allocation7 + $0x5b8] sm:$0xff]
    %v279 = vld [vmem:[#allocation7 + $0x5c0] sm:$0xff]
    %v280 = vld [vmem:[#allocation7 + $0x5c8] sm:$0xff]
    %v281 = vld [vmem:[#allocation7 + $0x5d0] sm:$0xff]
    %v282 = vld [vmem:[#allocation7 + $0x5d8] sm:$0xff]
    %v283 = vld [vmem:[#allocation7 + $0x5e0] sm:$0xff]
    %v284 = vld [vmem:[#allocation7 + $0x5e8] sm:$0xff]
    %v285 = vld [vmem:[#allocation7 + $0x5f0] sm:$0xff]
    %v286 = vld [vmem:[#allocation7 + $0x5f8] sm:$0xff]
    %v287 = vld [vmem:[#allocation7 + $0x600] sm:$0xff]
    %v288 = vld [vmem:[#allocation7 + $0x608] sm:$0xff]
    %v289 = vld [vmem:[#allocation7 + $0x610] sm:$0xff]
    %v290 = vld [vmem:[#allocation7 + $0x618] sm:$0xff]
    %v291 = vld [vmem:[#allocation7 + $0x620] sm:$0xff]
    %v292 = vld [vmem:[#allocation7 + $0x628] sm:$0xff]
    %v293 = vld [vmem:[#allocation7 + $0x630] sm:$0xff]
    %v294 = vld [vmem:[#allocation7 + $0x638] sm:$0xff]
    %v295 = vld [vmem:[#allocation7 + $0x640] sm:$0xff]
    %v296 = vld [vmem:[#allocation7 + $0x648] sm:$0xff]
    %v297 = vld [vmem:[#allocation7 + $0x650] sm:$0xff]
    %v298 = vld [vmem:[#allocation7 + $0x658] sm:$0xff]
    %v299 = vld [vmem:[#allocation7 + $0x660] sm:$0xff]
    %v300 = vld [vmem:[#allocation7 + $0x668] sm:$0xff]
    %v301 = vld [vmem:[#allocation7 + $0x670] sm:$0xff]
    %v302 = vld [vmem:[#allocation7 + $0x678] sm:$0xff]
    %v303 = vld [vmem:[#allocation7 + $0x680] sm:$0xff]
    %v304 = vld [vmem:[#allocation7 + $0x688] sm:$0xff]
    %v305 = vld [vmem:[#allocation7 + $0x690] sm:$0xff]
    %v306 = vld [vmem:[#allocation7 + $0x698] sm:$0xff]
    %v307 = vld [vmem:[#allocation7 + $0x6a0] sm:$0xff]
    %v308 = vld [vmem:[#allocation7 + $0x6a8] sm:$0xff]
    %v309 = vld [vmem:[#allocation7 + $0x6b0] sm:$0xff]
    %v310 = vld [vmem:[#allocation7 + $0x6b8] sm:$0xff]
    %v311 = vld [vmem:[#allocation7 + $0x6c0] sm:$0xff]
    %v312 = vld [vmem:[#allocation7 + $0x6c8] sm:$0xff]
    %v313 = vld [vmem:[#allocation7 + $0x6d0] sm:$0xff]
    %v314 = vld [vmem:[#allocation7 + $0x6d8] sm:$0xff]
    %v315 = vld [vmem:[#allocation7 + $0x6e0] sm:$0xff]
    %v316 = vld [vmem:[#allocation7 + $0x6e8] sm:$0xff]
    %v317 = vld [vmem:[#allocation7 + $0x6f0] sm:$0xff]
    %v318 = vld [vmem:[#allocation7 + $0x6f8] sm:$0xff]
    %v319 = vld [vmem:[#allocation7 + $0x700] sm:$0xff]
    %v320 = vld [vmem:[#allocation7 + $0x708] sm:$0xff]
    %v321 = vld [vmem:[#allocation7 + $0x710] sm:$0xff]
    %v322 = vld [vmem:[#allocation7 + $0x718] sm:$0xff]
    %v323 = vld [vmem:[#allocation7 + $0x720] sm:$0xff]
    %v324 = vld [vmem:[#allocation7 + $0x728] sm:$0xff]
    %v325 = vld [vmem:[#allocation7 + $0x730] sm:$0xff]
    %v326 = vld [vmem:[#allocation7 + $0x738] sm:$0xff]
    %v327 = vld [vmem:[#allocation7 + $0x740] sm:$0xff]
    %v328 = vld [vmem:[#allocation7 + $0x748] sm:$0xff]
    %v329 = vld [vmem:[#allocation7 + $0x750] sm:$0xff]
    %v330 = vld [vmem:[#allocation7 + $0x758] sm:$0xff]
    %v331 = vld [vmem:[#allocation7 + $0x760] sm:$0xff]
    %v332 = vld [vmem:[#allocation7 + $0x768] sm:$0xff]
    %v333 = vld [vmem:[#allocation7 + $0x770] sm:$0xff]
    %v334 = vld [vmem:[#allocation7 + $0x778] sm:$0xff]
    %v335 = vld [vmem:[#allocation7 + $0x780] sm:$0xff]
    %v336 = vld [vmem:[#allocation7 + $0x788] sm:$0xff]
    %v337 = vld [vmem:[#allocation7 + $0x790] sm:$0xff]
    %v338 = vld [vmem:[#allocation7 + $0x798] sm:$0xff]
    %v339 = vld [vmem:[#allocation7 + $0x7a0] sm:$0xff]
    %v340 = vld [vmem:[#allocation7 + $0x7a8] sm:$0xff]
    %v341 = vld [vmem:[#allocation7 + $0x7b0] sm:$0xff]
    %v342 = vld [vmem:[#allocation7 + $0x7b8] sm:$0xff]
    %v343 = vld [vmem:[#allocation7 + $0x7c0] sm:$0xff]
    %v344 = vld [vmem:[#allocation7 + $0x7c8] sm:$0xff]
    %v345 = vld [vmem:[#allocation7 + $0x7d0] sm:$0xff]
    %v346 = vld [vmem:[#allocation7 + $0x7d8] sm:$0xff]
    %v347 = vld [vmem:[#allocation7 + $0x7e0] sm:$0xff]
    %v348 = vld [vmem:[#allocation7 + $0x7e8] sm:$0xff]
    %v349 = vld [vmem:[#allocation7 + $0x7f0] sm:$0xff]
    %v350 = vld [vmem:[#allocation7 + $0x7f8] sm:$0xff]
    %v351 = vld [vmem:[#allocation7 + $0x800] sm:$0xff]
    %v352 = vld [vmem:[#allocation7 + $0x808] sm:$0xff]
    %v353 = vld [vmem:[#allocation7 + $0x810] sm:$0xff]
    %v354 = vld [vmem:[#allocation7 + $0x818] sm:$0xff]
    %v355 = vld [vmem:[#allocation7 + $0x820] sm:$0xff]
    %v356 = vld [vmem:[#allocation7 + $0x828] sm:$0xff]
    %v357 = vld [vmem:[#allocation7 + $0x830] sm:$0xff]
    %v358 = vld [vmem:[#allocation7 + $0x838] sm:$0xff]
    %v359 = vld [vmem:[#allocation7 + $0x840] sm:$0xff]
    %v360 = vld [vmem:[#allocation7 + $0x848] sm:$0xff]
    %v361 = vld [vmem:[#allocation7 + $0x850] sm:$0xff]
    %v362 = vld [vmem:[#allocation7 + $0x858] sm:$0xff]
    %v363 = vld [vmem:[#allocation7 + $0x860] sm:$0xff]
    %v364 = vld [vmem:[#allocation7 + $0x868] sm:$0xff]
    %v365 = vld [vmem:[#allocation7 + $0x870] sm:$0xff]
    %v366 = vld [vmem:[#allocation7 + $0x878] sm:$0xff]
    %v367 = vld [vmem:[#allocation7 + $0x880] sm:$0xff]
    %v368 = vld [vmem:[#allocation7 + $0x888] sm:$0xff]
    %v369 = vld [vmem:[#allocation7 + $0x890] sm:$0xff]
    %v370 = vld [vmem:[#allocation7 + $0x898] sm:$0xff]
    %v371 = vld [vmem:[#allocation7 + $0x8a0] sm:$0xff]
    %v372 = vld [vmem:[#allocation7 + $0x8a8] sm:$0xff]
    %v373 = vld [vmem:[#allocation7 + $0x8b0] sm:$0xff]
    %v374 = vld [vmem:[#allocation7 + $0x8b8] sm:$0xff]
    %v375 = vld [vmem:[#allocation7 + $0x8c0] sm:$0xff]
    %v376 = vld [vmem:[#allocation7 + $0x8c8] sm:$0xff]
    %v377 = vld [vmem:[#allocation7 + $0x8d0] sm:$0xff]
    %v378 = vld [vmem:[#allocation7 + $0x8d8] sm:$0xff]
    %v379 = vld [vmem:[#allocation7 + $0x8e0] sm:$0xff]
    %v380 = vld [vmem:[#allocation7 + $0x8e8] sm:$0xff]
    %v381 = vld [vmem:[#allocation7 + $0x8f0] sm:$0xff]
    %v382 = vld [vmem:[#allocation7 + $0x8f8] sm:$0xff]
    %v383 = vld [vmem:[#allocation7 + $0x900] sm:$0xff]
    %v384 = vld [vmem:[#allocation7 + $0x908] sm:$0xff]
    %v385 = vld [vmem:[#allocation7 + $0x910] sm:$0xff]
    %v386 = vld [vmem:[#allocation7 + $0x918] sm:$0xff]
    %v387 = vld [vmem:[#allocation7 + $0x920] sm:$0xff]
    %v388 = vld [vmem:[#allocation7 + $0x928] sm:$0xff]
    %v389 = vld [vmem:[#allocation7 + $0x930] sm:$0xff]
    %v390 = vld [vmem:[#allocation7 + $0x938] sm:$0xff]
    %v391 = vld [vmem:[#allocation7 + $0x940] sm:$0xff]
    %v392 = vld [vmem:[#allocation7 + $0x948] sm:$0xff]
    %v393 = vld [vmem:[#allocation7 + $0x950] sm:$0xff]
    %v394 = vld [vmem:[#allocation7 + $0x958] sm:$0xff]
    %v395 = vld [vmem:[#allocation7 + $0x960] sm:$0xff]
    %v396 = vld [vmem:[#allocation7 + $0x968] sm:$0xff]
    %v397 = vld [vmem:[#allocation7 + $0x970] sm:$0xff]
    %v398 = vld [vmem:[#allocation7 + $0x978] sm:$0xff]
    %v399 = vld [vmem:[#allocation7 + $0x980] sm:$0xff]
    %v400 = vld [vmem:[#allocation7 + $0x988] sm:$0xff]
    %v401 = vld [vmem:[#allocation7 + $0x990] sm:$0xff]
    %v402 = vld [vmem:[#allocation7 + $0x998] sm:$0xff]
    %v403 = vld [vmem:[#allocation7 + $0x9a0] sm:$0xff]
    %v404 = vld [vmem:[#allocation7 + $0x9a8] sm:$0xff]
    %v405 = vld [vmem:[#allocation7 + $0x9b0] sm:$0xff]
    %v406 = vld [vmem:[#allocation7 + $0x9b8] sm:$0xff]
    %v407 = vld [vmem:[#allocation7 + $0x9c0] sm:$0xff]
    %v408 = vld [vmem:[#allocation7 + $0x9c8] sm:$0xff]
    %v409 = vld [vmem:[#allocation7 + $0x9d0] sm:$0xff]
    %v410 = vld [vmem:[#allocation7 + $0x9d8] sm:$0xff]
    %v411 = vld [vmem:[#allocation7 + $0x9e0] sm:$0xff]
    %v412 = vld [vmem:[#allocation7 + $0x9e8] sm:$0xff]
    %v413 = vld [vmem:[#allocation7 + $0x9f0] sm:$0xff]
    %v414 = vld [vmem:[#allocation7 + $0x9f8] sm:$0xff]
    %v415 = vld [vmem:[#allocation7 + $0xa00] sm:$0xff]
    %v416 = vld [vmem:[#allocation7 + $0xa08] sm:$0xff]
    %v417 = vld [vmem:[#allocation7 + $0xa10] sm:$0xff]
    %v418 = vld [vmem:[#allocation7 + $0xa18] sm:$0xff]
    %v419 = vld [vmem:[#allocation7 + $0xa20] sm:$0xff]
    %v420 = vld [vmem:[#allocation7 + $0xa28] sm:$0xff]
    %v421 = vld [vmem:[#allocation7 + $0xa30] sm:$0xff]
    %v422 = vld [vmem:[#allocation7 + $0xa38] sm:$0xff]
    %v423 = vld [vmem:[#allocation7 + $0xa40] sm:$0xff]
    %v424 = vld [vmem:[#allocation7 + $0xa48] sm:$0xff]
    %v425 = vld [vmem:[#allocation7 + $0xa50] sm:$0xff]
    %v426 = vld [vmem:[#allocation7 + $0xa58] sm:$0xff]
    %v427 = vld [vmem:[#allocation7 + $0xa60] sm:$0xff]
    %v428 = vld [vmem:[#allocation7 + $0xa68] sm:$0xff]
    %v429 = vld [vmem:[#allocation7 + $0xa70] sm:$0xff]
    %v430 = vld [vmem:[#allocation7 + $0xa78] sm:$0xff]
    %v431 = vld [vmem:[#allocation7 + $0xa80] sm:$0xff]
    %v432 = vld [vmem:[#allocation7 + $0xa88] sm:$0xff]
    %v433 = vld [vmem:[#allocation7 + $0xa90] sm:$0xff]
    %v434 = vld [vmem:[#allocation7 + $0xa98] sm:$0xff]
    %v435 = vld [vmem:[#allocation7 + $0xaa0] sm:$0xff]
    %v436 = vld [vmem:[#allocation7 + $0xaa8] sm:$0xff]
    %v437 = vld [vmem:[#allocation7 + $0xab0] sm:$0xff]
    %v438 = vld [vmem:[#allocation7 + $0xab8] sm:$0xff]
    %v439 = vld [vmem:[#allocation7 + $0xac0] sm:$0xff]
    %v440 = vld [vmem:[#allocation7 + $0xac8] sm:$0xff]
    %v441 = vld [vmem:[#allocation7 + $0xad0] sm:$0xff]
    %v442 = vld [vmem:[#allocation7 + $0xad8] sm:$0xff]
    %v443 = vld [vmem:[#allocation7 + $0xae0] sm:$0xff]
    %v444 = vld [vmem:[#allocation7 + $0xae8] sm:$0xff]
    %v445 = vld [vmem:[#allocation7 + $0xaf0] sm:$0xff]
    %v446 = vld [vmem:[#allocation7 + $0xaf8] sm:$0xff]
    %v447 = vld [vmem:[#allocation7 + $0xb00] sm:$0xff]
    %v448 = vld [vmem:[#allocation7 + $0xb08] sm:$0xff]
    %v449 = vld [vmem:[#allocation7 + $0xb10] sm:$0xff]
    %v450 = vld [vmem:[#allocation7 + $0xb18] sm:$0xff]
    %v451 = vld [vmem:[#allocation7 + $0xb20] sm:$0xff]
    %v452 = vld [vmem:[#allocation7 + $0xb28] sm:$0xff]
    %v453 = vld [vmem:[#allocation7 + $0xb30] sm:$0xff]
    %v454 = vld [vmem:[#allocation7 + $0xb38] sm:$0xff]
    %v455 = vld [vmem:[#allocation7 + $0xb40] sm:$0xff]
    %v456 = vld [vmem:[#allocation7 + $0xb48] sm:$0xff]
    %v457 = vld [vmem:[#allocation7 + $0xb50] sm:$0xff]
    %v458 = vld [vmem:[#allocation7 + $0xb58] sm:$0xff]
    %v459 = vld [vmem:[#allocation7 + $0xb60] sm:$0xff]
    %v460 = vld [vmem:[#allocation7 + $0xb68] sm:$0xff]
    %v461 = vld [vmem:[#allocation7 + $0xb70] sm:$0xff]
    %v462 = vld [vmem:[#allocation7 + $0xb78] sm:$0xff]
    %v463 = vld [vmem:[#allocation7 + $0xb80] sm:$0xff]
    %v464 = vld [vmem:[#allocation7 + $0xb88] sm:$0xff]
    %v465 = vld [vmem:[#allocation7 + $0xb90] sm:$0xff]
    %v466 = vld [vmem:[#allocation7 + $0xb98] sm:$0xff]
    %v467 = vld [vmem:[#allocation7 + $0xba0] sm:$0xff]
    %v468 = vld [vmem:[#allocation7 + $0xba8] sm:$0xff]
    %v469 = vld [vmem:[#allocation7 + $0xbb0] sm:$0xff]
    %v470 = vld [vmem:[#allocation7 + $0xbb8] sm:$0xff]
    %v471 = vld [vmem:[#allocation7 + $0xbc0] sm:$0xff]
    %v472 = vld [vmem:[#allocation7 + $0xbc8] sm:$0xff]
    %v473 = vld [vmem:[#allocation7 + $0xbd0] sm:$0xff]
    %v474 = vld [vmem:[#allocation7 + $0xbd8] sm:$0xff]
    %v475 = vld [vmem:[#allocation7 + $0xbe0] sm:$0xff]
    %v476 = vld [vmem:[#allocation7 + $0xbe8] sm:$0xff]
    %v477 = vld [vmem:[#allocation7 + $0xbf0] sm:$0xff]
    %v478 = vld [vmem:[#allocation7 + $0xbf8] sm:$0xff]
    %v479 = vld [vmem:[#allocation7 + $0xc00] sm:$0xff]
    %v480 = vld [vmem:[#allocation7 + $0xc08] sm:$0xff]
    %v481 = vld [vmem:[#allocation7 + $0xc10] sm:$0xff]
    %v482 = vld [vmem:[#allocation7 + $0xc18] sm:$0xff]
    %v483 = vld [vmem:[#allocation7 + $0xc20] sm:$0xff]
    %v484 = vld [vmem:[#allocation7 + $0xc28] sm:$0xff]
    %v485 = vld [vmem:[#allocation7 + $0xc30] sm:$0xff]
    %v486 = vld [vmem:[#allocation7 + $0xc38] sm:$0xff]
    %v487 = vld [vmem:[#allocation7 + $0xc40] sm:$0xff]
    %v488 = vld [vmem:[#allocation7 + $0xc48] sm:$0xff]
    %v489 = vld [vmem:[#allocation7 + $0xc50] sm:$0xff]
    %v490 = vld [vmem:[#allocation7 + $0xc58] sm:$0xff]
    %v491 = vld [vmem:[#allocation7 + $0xc60] sm:$0xff]
    %v492 = vld [vmem:[#allocation7 + $0xc68] sm:$0xff]
    %v493 = vld [vmem:[#allocation7 + $0xc70] sm:$0xff]
    %v494 = vld [vmem:[#allocation7 + $0xc78] sm:$0xff]
    %v495 = vld [vmem:[#allocation7 + $0xc80] sm:$0xff]
    %v496 = vld [vmem:[#allocation7 + $0xc88] sm:$0xff]
    %v497 = vld [vmem:[#allocation7 + $0xc90] sm:$0xff]
    %v498 = vld [vmem:[#allocation7 + $0xc98] sm:$0xff]
    %v499 = vld [vmem:[#allocation7 + $0xca0] sm:$0xff]
    %v500 = vld [vmem:[#allocation7 + $0xca8] sm:$0xff]
    %v501 = vld [vmem:[#allocation7 + $0xcb0] sm:$0xff]
    %v502 = vld [vmem:[#allocation7 + $0xcb8] sm:$0xff]
    %v503 = vld [vmem:[#allocation7 + $0xcc0] sm:$0xff]
    %v504 = vld [vmem:[#allocation7 + $0xcc8] sm:$0xff]
    %v505 = vld [vmem:[#allocation7 + $0xcd0] sm:$0xff]
    %v506 = vld [vmem:[#allocation7 + $0xcd8] sm:$0xff]
    %v507 = vld [vmem:[#allocation7 + $0xce0] sm:$0xff]
    %v508 = vld [vmem:[#allocation7 + $0xce8] sm:$0xff]
    %v509 = vld [vmem:[#allocation7 + $0xcf0] sm:$0xff]
    %v510 = vld [vmem:[#allocation7 + $0xcf8] sm:$0xff]
    %v511 = vld [vmem:[#allocation7 + $0xd00] sm:$0xff]
    %v512 = vld [vmem:[#allocation7 + $0xd08] sm:$0xff]
    %v513 = vld [vmem:[#allocation7 + $0xd10] sm:$0xff]
    %v514 = vld [vmem:[#allocation7 + $0xd18] sm:$0xff]
    %v515 = vld [vmem:[#allocation7 + $0xd20] sm:$0xff]
    %v516 = vld [vmem:[#allocation7 + $0xd28] sm:$0xff]
    %v517 = vld [vmem:[#allocation7 + $0xd30] sm:$0xff]
    %v518 = vld [vmem:[#allocation7 + $0xd38] sm:$0xff]
    %v519 = vld [vmem:[#allocation7 + $0xd40] sm:$0xff]
    %v520 = vld [vmem:[#allocation7 + $0xd48] sm:$0xff]
    %v521 = vld [vmem:[#allocation7 + $0xd50] sm:$0xff]
    %v522 = vld [vmem:[#allocation7 + $0xd58] sm:$0xff]
    %v523 = vld [vmem:[#allocation7 + $0xd60] sm:$0xff]
    %v524 = vld [vmem:[#allocation7 + $0xd68] sm:$0xff]
    %v525 = vld [vmem:[#allocation7 + $0xd70] sm:$0xff]
    %v526 = vld [vmem:[#allocation7 + $0xd78] sm:$0xff]
    %527 = vmatprep.subr.mxu0 %v96
    %528 = vmatpush1.msra.mxu0 %v95
    %529 = vmatprep.subr.mxu0 %v105
    %530 = vmatpush1.msra.mxu0 %v104
    %531 = vmatprep.subr.mxu0 %v114
    %532 = vmatpush1.msra.mxu0 %v113
    %533 = vmatprep.subr.mxu0 %v123
    %534 = vmatpush1.msra.mxu0 %v122
    %535 = vmatprep.subr.mxu0 %v132
    %536 = vmatpush1.msra.mxu0 %v131
    %537 = vmatprep.subr.mxu0 %v141
    %538 = vmatpush1.msra.mxu0 %v140
    %539 = vmatprep.subr.mxu0 %v150
    %540 = vmatpush1.msra.mxu0 %v149
    %541 = vmatprep.subr.mxu0 %v159
    %542 = vmatpush1.msra.mxu0 %v158
    %543 = vmatprep.subr.mxu0 %v168
    %544 = vmatpush1.msra.mxu0 %v167
    %545 = vmatprep.subr.mxu0 %v177
    %546 = vmatpush1.msra.mxu0 %v176
    %547 = vmatprep.subr.mxu0 %v186
    %548 = vmatpush1.msra.mxu0 %v185
    %549 = vmatprep.subr.mxu0 %v195
    %550 = vmatpush1.msra.mxu0 %v194
    %551 = vmatprep.subr.mxu0 %v204
    %552 = vmatpush1.msra.mxu0 %v203
    %553 = vmatprep.subr.mxu0 %v213
    %554 = vmatpush1.msra.mxu0 %v212
    %555 = vmatprep.subr.mxu0 %v222
    %556 = vmatpush1.msra.mxu0 %v221
    %557 = vmatprep.subr.mxu0 %v231
    %558 = vmatpush1.msra.mxu0 %v230
    %559 = vmatprep.subr.mxu0 %v240
    %560 = vmatpush1.msra.mxu0 %v239
    %561 = vmatprep.subr.mxu0 %v249
    %562 = vmatpush1.msra.mxu0 %v248
    %563 = vmatprep.subr.mxu0 %v258
    %564 = vmatpush1.msra.mxu0 %v257
    %565 = vmatprep.subr.mxu0 %v267
    %566 = vmatpush1.msra.mxu0 %v266
    %567 = vmatprep.subr.mxu0 %v276
    %568 = vmatpush1.msra.mxu0 %v275
    %569 = vmatprep.subr.mxu0 %v285
    %570 = vmatpush1.msra.mxu0 %v284
    %571 = vmatprep.subr.mxu0 %v294
    %572 = vmatpush1.msra.mxu0 %v293
    %573 = vmatprep.subr.mxu0 %v303
    %574 = vmatpush1.msra.mxu0 %v302
    %575 = vmatprep.subr.mxu0 %v312
    %576 = vmatpush1.msra.mxu0 %v311
    %577 = vmatprep.subr.mxu0 %v321
    %578 = vmatpush1.msra.mxu0 %v320
    %579 = vmatprep.subr.mxu0 %v330
    %580 = vmatpush1.msra.mxu0 %v329
    %581 = vmatprep.subr.mxu0 %v339
    %582 = vmatpush1.msra.mxu0 %v338
    %583 = vmatprep.subr.mxu0 %v348
    %584 = vmatpush1.msra.mxu0 %v347
    %585 = vmatprep.subr.mxu0 %v357
    %586 = vmatpush1.msra.mxu0 %v356
    %587 = vmatprep.subr.mxu0 %v366
    %588 = vmatpush1.msra.mxu0 %v365
    %589 = vmatprep.subr.mxu0 %v375
    %590 = vmatpush1.msra.mxu0 %v374
    %591 = vmatprep.mubr.f32.mxu0 %v88
    %592 = vmatmul.mubr.f32.gmra.mrb[0].mxu0 %v87
    %v593 = vpop.f32.mrb[0].mxu0
    %v594 = vadd.f32 0.0, %v593
    %v595 = vpop.f32.mrb[0].mxu0
    %v596 = vadd.f32 0.0, %v595
    %597 = vmatprep.mubr.f32.mxu0 %v91
    %598 = vmatmul.mubr.f32.gmra.mrb[0].mxu0 %v90
    %v599 = vpop.f32.mrb[0].mxu0
    %v600 = vadd.f32 0.0, %v599
    %v601 = vpop.f32.mrb[0].mxu0
    %v602 = vadd.f32 0.0, %v601
    %603 = vdwg.mxu0
    %604 = vmatprep.subr.mxu0 %v384
    %605 = vmatpush1.msra.mxu0 %v383
    %606 = vmatprep.subr.mxu0 %v393
    %607 = vmatpush1.msra.mxu0 %v392
    %608 = vmatprep.subr.mxu0 %v402
    %609 = vmatpush1.msra.mxu0 %v401
    %610 = vmatprep.subr.mxu0 %v411
    %611 = vmatpush1.msra.mxu0 %v410
    %612 = vmatprep.subr.mxu0 %v420
    %613 = vmatpush1.msra.mxu0 %v419
    %614 = vmatprep.subr.mxu0 %v429
    %615 = vmatpush1.msra.mxu0 %v428
    %616 = vmatprep.subr.mxu0 %v438
    %617 = vmatpush1.msra.mxu0 %v437
    %618 = vmatprep.subr.mxu0 %v447
    %619 = vmatpush1.msra.mxu0 %v446
    %620 = vmatprep.subr.mxu0 %v456
    %621 = vmatpush1.msra.mxu0 %v455
    %622 = vmatprep.subr.mxu0 %v465
    %623 = vmatpush1.msra.mxu0 %v464
    %624 = vmatprep.subr.mxu0 %v474
    %625 = vmatpush1.msra.mxu0 %v473
    %626 = vmatprep.subr.mxu0 %v483
    %627 = vmatpush1.msra.mxu0 %v482
    %628 = vmatprep.subr.mxu0 %v492
    %629 = vmatpush1.msra.mxu0 %v491
    %630 = vmatprep.subr.mxu0 %v501
    %631 = vmatpush1.msra.mxu0 %v500
    %632 = vmatprep.subr.mxu0 %v510
    %633 = vmatpush1.msra.mxu0 %v509
    %634 = vmatprep.subr.mxu0 %v519
    %635 = vmatpush1.msra.mxu0 %v518
    %636 = vmatprep.subr.mxu0 0.0
    %637 = vmatpush1.msra.mxu0 0.0
    %638 = vmatprep.subr.mxu0 0.0
    %639 = vmatpush1.msra.mxu0 0.0
    %640 = vmatprep.subr.mxu0 0.0
    %641 = vmatpush1.msra.mxu0 0.0
    %642 = vmatprep.subr.mxu0 0.0
    %643 = vmatpush1.msra.mxu0 0.0
    %644 = vmatprep.subr.mxu0 0.0
    %645 = vmatpush1.msra.mxu0 0.0
    %646 = vmatprep.subr.mxu0 0.0
    %647 = vmatpush1.msra.mxu0 0.0
    %648 = vmatprep.subr.mxu0 0.0
    %649 = vmatpush1.msra.mxu0 0.0
    %650 = vmatprep.subr.mxu0 0.0
    %651 = vmatpush1.msra.mxu0 0.0
    %652 = vmatprep.subr.mxu0 0.0
    %653 = vmatpush1.msra.mxu0 0.0
    %654 = vmatprep.subr.mxu0 0.0
    %655 = vmatpush1.msra.mxu0 0.0
    %656 = vmatprep.subr.mxu0 0.0
    %657 = vmatpush1.msra.mxu0 0.0
    %658 = vmatprep.subr.mxu0 0.0
    %659 = vmatpush1.msra.mxu0 0.0
    %660 = vmatprep.subr.mxu0 0.0
    %661 = vmatpush1.msra.mxu0 0.0
    %662 = vmatprep.subr.mxu0 0.0
    %663 = vmatpush1.msra.mxu0 0.0
    %664 = vmatprep.subr.mxu0 0.0
    %665 = vmatpush1.msra.mxu0 0.0
    %666 = vmatprep.subr.mxu0 0.0
    %667 = vmatpush1.msra.mxu0 0.0
    %668 = vmatprep.mubr.f32.mxu0 0.0
    %669 = vmatmul.mubr.f32.gmra.mrb[0].mxu0 %v89
    %v670 = vpop.f32.mrb[0].mxu0
    %v671 = vadd.f32 %v594, %v670
    %v672 = vpop.f32.mrb[0].mxu0
    %v673 = vadd.f32 %v596, %v672
    %674 = vmatprep.mubr.f32.mxu0 0.0
    %675 = vmatmul.mubr.f32.gmra.mrb[0].mxu0 %v92
    %v676 = vpop.f32.mrb[0].mxu0
    %v677 = vadd.f32 %v600, %v676
    %v678 = vpop.f32.mrb[0].mxu0
    %v679 = vadd.f32 %v602, %v678
    %680 = vdwg.mxu0
    %681 = vmatprep.subr.mxu0 %v98
    %682 = vmatpush1.msra.mxu0 %v97
    %683 = vmatprep.subr.mxu0 %v107
    %684 = vmatpush1.msra.mxu0 %v106
    %685 = vmatprep.subr.mxu0 %v116
    %686 = vmatpush1.msra.mxu0 %v115
    %687 = vmatprep.subr.mxu0 %v125
    %688 = vmatpush1.msra.mxu0 %v124
    %689 = vmatprep.subr.mxu0 %v134
    %690 = vmatpush1.msra.mxu0 %v133
    %691 = vmatprep.subr.mxu0 %v143
    %692 = vmatpush1.msra.mxu0 %v142
    %693 = vmatprep.subr.mxu0 %v152
    %694 = vmatpush1.msra.mxu0 %v151
    %695 = vmatprep.subr.mxu0 %v161
    %696 = vmatpush1.msra.mxu0 %v160
    %697 = vmatprep.subr.mxu0 %v170
    %698 = vmatpush1.msra.mxu0 %v169
    %699 = vmatprep.subr.mxu0 %v179
    %700 = vmatpush1.msra.mxu0 %v178
    %701 = vmatprep.subr.mxu0 %v188
    %702 = vmatpush1.msra.mxu0 %v187
    %703 = vmatprep.subr.mxu0 %v197
    %704 = vmatpush1.msra.mxu0 %v196
    %705 = vmatprep.subr.mxu0 %v206
    %706 = vmatpush1.msra.mxu0 %v205
    %707 = vmatprep.subr.mxu0 %v215
    %708 = vmatpush1.msra.mxu0 %v214
    %709 = vmatprep.subr.mxu0 %v224
    %710 = vmatpush1.msra.mxu0 %v223
    %711 = vmatprep.subr.mxu0 %v233
    %712 = vmatpush1.msra.mxu0 %v232
    %713 = vmatprep.subr.mxu0 %v242
    %714 = vmatpush1.msra.mxu0 %v241
    %715 = vmatprep.subr.mxu0 %v251
    %716 = vmatpush1.msra.mxu0 %v250
    %717 = vmatprep.subr.mxu0 %v260
    %718 = vmatpush1.msra.mxu0 %v259
    %719 = vmatprep.subr.mxu0 %v269
    %720 = vmatpush1.msra.mxu0 %v268
    %721 = vmatprep.subr.mxu0 %v278
    %722 = vmatpush1.msra.mxu0 %v277
    %723 = vmatprep.subr.mxu0 %v287
    %724 = vmatpush1.msra.mxu0 %v286
    %725 = vmatprep.subr.mxu0 %v296
    %726 = vmatpush1.msra.mxu0 %v295
    %727 = vmatprep.subr.mxu0 %v305
    %728 = vmatpush1.msra.mxu0 %v304
    %729 = vmatprep.subr.mxu0 %v314
    %730 = vmatpush1.msra.mxu0 %v313
    %731 = vmatprep.subr.mxu0 %v323
    %732 = vmatpush1.msra.mxu0 %v322
    %733 = vmatprep.subr.mxu0 %v332
    %734 = vmatpush1.msra.mxu0 %v331
    %735 = vmatprep.subr.mxu0 %v341
    %736 = vmatpush1.msra.mxu0 %v340
    %737 = vmatprep.subr.mxu0 %v350
    %738 = vmatpush1.msra.mxu0 %v349
    %739 = vmatprep.subr.mxu0 %v359
    %740 = vmatpush1.msra.mxu0 %v358
    %741 = vmatprep.subr.mxu0 %v368
    %742 = vmatpush1.msra.mxu0 %v367
    %743 = vmatprep.subr.mxu0 %v377
    %744 = vmatpush1.msra.mxu0 %v376
    %745 = vmatprep.mubr.f32.mxu0 %v88
    %746 = vmatmul.mubr.f32.gmra.mrb[0].mxu0 %v87
    %v747 = vpop.f32.mrb[0].mxu0
    %v748 = vadd.f32 0.0, %v747
    %v749 = vpop.f32.mrb[0].mxu0
    %v750 = vadd.f32 0.0, %v749
    %751 = vmatprep.mubr.f32.mxu0 %v91
    %752 = vmatmul.mubr.f32.gmra.mrb[0].mxu0 %v90
    %v753 = vpop.f32.mrb[0].mxu0
    %v754 = vadd.f32 0.0, %v753
    %v755 = vpop.f32.mrb[0].mxu0
    %v756 = vadd.f32 0.0, %v755
    %757 = vdwg.mxu0
    %758 = vmatprep.subr.mxu0 %v386
    %759 = vmatpush1.msra.mxu0 %v385
    %760 = vmatprep.subr.mxu0 %v395
    %761 = vmatpush1.msra.mxu0 %v394
    %762 = vmatprep.subr.mxu0 %v404
    %763 = vmatpush1.msra.mxu0 %v403
    %764 = vmatprep.subr.mxu0 %v413
    %765 = vmatpush1.msra.mxu0 %v412
    %766 = vmatprep.subr.mxu0 %v422
    %767 = vmatpush1.msra.mxu0 %v421
    %768 = vmatprep.subr.mxu0 %v431
    %769 = vmatpush1.msra.mxu0 %v430
    %770 = vmatprep.subr.mxu0 %v440
    %771 = vmatpush1.msra.mxu0 %v439
    %772 = vmatprep.subr.mxu0 %v449
    %773 = vmatpush1.msra.mxu0 %v448
    %774 = vmatprep.subr.mxu0 %v458
    %775 = vmatpush1.msra.mxu0 %v457
    %776 = vmatprep.subr.mxu0 %v467
    %777 = vmatpush1.msra.mxu0 %v466
    %778 = vmatprep.subr.mxu0 %v476
    %779 = vmatpush1.msra.mxu0 %v475
    %780 = vmatprep.subr.mxu0 %v485
    %781 = vmatpush1.msra.mxu0 %v484
    %782 = vmatprep.subr.mxu0 %v494
    %783 = vmatpush1.msra.mxu0 %v493
    %784 = vmatprep.subr.mxu0 %v503
    %785 = vmatpush1.msra.mxu0 %v502
    %786 = vmatprep.subr.mxu0 %v512
    %787 = vmatpush1.msra.mxu0 %v511
    %788 = vmatprep.subr.mxu0 %v521
    %789 = vmatpush1.msra.mxu0 %v520
    %790 = vmatprep.subr.mxu0 0.0
    %791 = vmatpush1.msra.mxu0 0.0
    %792 = vmatprep.subr.mxu0 0.0
    %793 = vmatpush1.msra.mxu0 0.0
    %794 = vmatprep.subr.mxu0 0.0
    %795 = vmatpush1.msra.mxu0 0.0
    %796 = vmatprep.subr.mxu0 0.0
    %797 = vmatpush1.msra.mxu0 0.0
    %798 = vmatprep.subr.mxu0 0.0
    %799 = vmatpush1.msra.mxu0 0.0
    %800 = vmatprep.subr.mxu0 0.0
    %801 = vmatpush1.msra.mxu0 0.0
    %802 = vmatprep.subr.mxu0 0.0
    %803 = vmatpush1.msra.mxu0 0.0
    %804 = vmatprep.subr.mxu0 0.0
    %805 = vmatpush1.msra.mxu0 0.0
    %806 = vmatprep.subr.mxu0 0.0
    %807 = vmatpush1.msra.mxu0 0.0
    %808 = vmatprep.subr.mxu0 0.0
    %809 = vmatpush1.msra.mxu0 0.0
    %810 = vmatprep.subr.mxu0 0.0
    %811 = vmatpush1.msra.mxu0 0.0
    %812 = vmatprep.subr.mxu0 0.0
    %813 = vmatpush1.msra.mxu0 0.0
    %814 = vmatprep.subr.mxu0 0.0
    %815 = vmatpush1.msra.mxu0 0.0
    %816 = vmatprep.subr.mxu0 0.0
    %817 = vmatpush1.msra.mxu0 0.0
    %818 = vmatprep.subr.mxu0 0.0
    %819 = vmatpush1.msra.mxu0 0.0
    %820 = vmatprep.subr.mxu0 0.0
    %821 = vmatpush1.msra.mxu0 0.0
    %822 = vmatprep.mubr.f32.mxu0 0.0
    %823 = vmatmul.mubr.f32.gmra.mrb[0].mxu0 %v89
    %v824 = vpop.f32.mrb[0].mxu0
    %v825 = vadd.f32 %v748, %v824
    %v826 = vpop.f32.mrb[0].mxu0
    %v827 = vadd.f32 %v750, %v826
    %828 = vmatprep.mubr.f32.mxu0 0.0
    %829 = vmatmul.mubr.f32.gmra.mrb[0].mxu0 %v92
    %v830 = vpop.f32.mrb[0].mxu0
    %v831 = vadd.f32 %v754, %v830
    %v832 = vpop.f32.mrb[0].mxu0
    %v833 = vadd.f32 %v756, %v832
    %834 = vdwg.mxu0
    %835 = vmatprep.subr.mxu0 %v100
    %836 = vmatpush1.msra.mxu0 %v99
    %837 = vmatprep.subr.mxu0 %v109
    %838 = vmatpush1.msra.mxu0 %v108
    %839 = vmatprep.subr.mxu0 %v118
    %840 = vmatpush1.msra.mxu0 %v117
    %841 = vmatprep.subr.mxu0 %v127
    %842 = vmatpush1.msra.mxu0 %v126
    %843 = vmatprep.subr.mxu0 %v136
    %844 = vmatpush1.msra.mxu0 %v135
    %845 = vmatprep.subr.mxu0 %v145
    %846 = vmatpush1.msra.mxu0 %v144
    %847 = vmatprep.subr.mxu0 %v154
    %848 = vmatpush1.msra.mxu0 %v153
    %849 = vmatprep.subr.mxu0 %v163
    %850 = vmatpush1.msra.mxu0 %v162
    %851 = vmatprep.subr.mxu0 %v172
    %852 = vmatpush1.msra.mxu0 %v171
    %853 = vmatprep.subr.mxu0 %v181
    %854 = vmatpush1.msra.mxu0 %v180
    %855 = vmatprep.subr.mxu0 %v190
    %856 = vmatpush1.msra.mxu0 %v189
    %857 = vmatprep.subr.mxu0 %v199
    %858 = vmatpush1.msra.mxu0 %v198
    %859 = vmatprep.subr.mxu0 %v208
    %860 = vmatpush1.msra.mxu0 %v207
    %861 = vmatprep.subr.mxu0 %v217
    %862 = vmatpush1.msra.mxu0 %v216
    %863 = vmatprep.subr.mxu0 %v226
    %864 = vmatpush1.msra.mxu0 %v225
    %865 = vmatprep.subr.mxu0 %v235
    %866 = vmatpush1.msra.mxu0 %v234
    %867 = vmatprep.subr.mxu0 %v244
    %868 = vmatpush1.msra.mxu0 %v243
    %869 = vmatprep.subr.mxu0 %v253
    %870 = vmatpush1.msra.mxu0 %v252
    %871 = vmatprep.subr.mxu0 %v262
    %872 = vmatpush1.msra.mxu0 %v261
    %873 = vmatprep.subr.mxu0 %v271
    %874 = vmatpush1.msra.mxu0 %v270
    %875 = vmatprep.subr.mxu0 %v280
    %876 = vmatpush1.msra.mxu0 %v279
    %877 = vmatprep.subr.mxu0 %v289
    %878 = vmatpush1.msra.mxu0 %v288
    %879 = vmatprep.subr.mxu0 %v298
    %880 = vmatpush1.msra.mxu0 %v297
    %881 = vmatprep.subr.mxu0 %v307
    %882 = vmatpush1.msra.mxu0 %v306
    %883 = vmatprep.subr.mxu0 %v316
    %884 = vmatpush1.msra.mxu0 %v315
    %885 = vmatprep.subr.mxu0 %v325
    %886 = vmatpush1.msra.mxu0 %v324
    %887 = vmatprep.subr.mxu0 %v334
    %888 = vmatpush1.msra.mxu0 %v333
    %889 = vmatprep.subr.mxu0 %v343
    %890 = vmatpush1.msra.mxu0 %v342
    %891 = vmatprep.subr.mxu0 %v352
    %892 = vmatpush1.msra.mxu0 %v351
    %893 = vmatprep.subr.mxu0 %v361
    %894 = vmatpush1.msra.mxu0 %v360
    %895 = vmatprep.subr.mxu0 %v370
    %896 = vmatpush1.msra.mxu0 %v369
    %897 = vmatprep.subr.mxu0 %v379
    %898 = vmatpush1.msra.mxu0 %v378
    %899 = vmatprep.mubr.f32.mxu0 %v88
    %900 = vmatmul.mubr.f32.gmra.mrb[0].mxu0 %v87
    %v901 = vpop.f32.mrb[0].mxu0
    %v902 = vadd.f32 0.0, %v901
    %v903 = vpop.f32.mrb[0].mxu0
    %v904 = vadd.f32 0.0, %v903
    %905 = vmatprep.mubr.f32.mxu0 %v91
    %906 = vmatmul.mubr.f32.gmra.mrb[0].mxu0 %v90
    %v907 = vpop.f32.mrb[0].mxu0
    %v908 = vadd.f32 0.0, %v907
    %v909 = vpop.f32.mrb[0].mxu0
    %v910 = vadd.f32 0.0, %v909
    %911 = vdwg.mxu0
    %912 = vmatprep.subr.mxu0 %v388
    %913 = vmatpush1.msra.mxu0 %v387
    %914 = vmatprep.subr.mxu0 %v397
    %915 = vmatpush1.msra.mxu0 %v396
    %916 = vmatprep.subr.mxu0 %v406
    %917 = vmatpush1.msra.mxu0 %v405
    %918 = vmatprep.subr.mxu0 %v415
    %919 = vmatpush1.msra.mxu0 %v414
    %920 = vmatprep.subr.mxu0 %v424
    %921 = vmatpush1.msra.mxu0 %v423
    %922 = vmatprep.subr.mxu0 %v433
    %923 = vmatpush1.msra.mxu0 %v432
    %924 = vmatprep.subr.mxu0 %v442
    %925 = vmatpush1.msra.mxu0 %v441
    %926 = vmatprep.subr.mxu0 %v451
    %927 = vmatpush1.msra.mxu0 %v450
    %928 = vmatprep.subr.mxu0 %v460
    %929 = vmatpush1.msra.mxu0 %v459
    %930 = vmatprep.subr.mxu0 %v469
    %931 = vmatpush1.msra.mxu0 %v468
    %932 = vmatprep.subr.mxu0 %v478
    %933 = vmatpush1.msra.mxu0 %v477
    %934 = vmatprep.subr.mxu0 %v487
    %935 = vmatpush1.msra.mxu0 %v486
    %936 = vmatprep.subr.mxu0 %v496
    %937 = vmatpush1.msra.mxu0 %v495
    %938 = vmatprep.subr.mxu0 %v505
    %939 = vmatpush1.msra.mxu0 %v504
    %940 = vmatprep.subr.mxu0 %v514
    %941 = vmatpush1.msra.mxu0 %v513
    %942 = vmatprep.subr.mxu0 %v523
    %943 = vmatpush1.msra.mxu0 %v522
    %944 = vmatprep.subr.mxu0 0.0
    %945 = vmatpush1.msra.mxu0 0.0
    %946 = vmatprep.subr.mxu0 0.0
    %947 = vmatpush1.msra.mxu0 0.0
    %948 = vmatprep.subr.mxu0 0.0
    %949 = vmatpush1.msra.mxu0 0.0
    %950 = vmatprep.subr.mxu0 0.0
    %951 = vmatpush1.msra.mxu0 0.0
    %952 = vmatprep.subr.mxu0 0.0
    %953 = vmatpush1.msra.mxu0 0.0
    %954 = vmatprep.subr.mxu0 0.0
    %955 = vmatpush1.msra.mxu0 0.0
    %956 = vmatprep.subr.mxu0 0.0
    %957 = vmatpush1.msra.mxu0 0.0
    %958 = vmatprep.subr.mxu0 0.0
    %959 = vmatpush1.msra.mxu0 0.0
    %960 = vmatprep.subr.mxu0 0.0
    %961 = vmatpush1.msra.mxu0 0.0
    %962 = vmatprep.subr.mxu0 0.0
    %963 = vmatpush1.msra.mxu0 0.0
    %964 = vmatprep.subr.mxu0 0.0
    %965 = vmatpush1.msra.mxu0 0.0
    %966 = vmatprep.subr.mxu0 0.0
    %967 = vmatpush1.msra.mxu0 0.0
    %968 = vmatprep.subr.mxu0 0.0
    %969 = vmatpush1.msra.mxu0 0.0
    %970 = vmatprep.subr.mxu0 0.0
    %971 = vmatpush1.msra.mxu0 0.0
    %972 = vmatprep.subr.mxu0 0.0
    %973 = vmatpush1.msra.mxu0 0.0
    %974 = vmatprep.subr.mxu0 0.0
    %975 = vmatpush1.msra.mxu0 0.0
    %976 = vmatprep.mubr.f32.mxu0 0.0
    %977 = vmatmul.mubr.f32.gmra.mrb[0].mxu0 %v89
    %v978 = vpop.f32.mrb[0].mxu0
    %v979 = vadd.f32 %v902, %v978
    %v980 = vpop.f32.mrb[0].mxu0
    %v981 = vadd.f32 %v904, %v980
    %982 = vmatprep.mubr.f32.mxu0 0.0
    %983 = vmatmul.mubr.f32.gmra.mrb[0].mxu0 %v92
    %v984 = vpop.f32.mrb[0].mxu0
    %v985 = vadd.f32 %v908, %v984
    %v986 = vpop.f32.mrb[0].mxu0
    %v987 = vadd.f32 %v910, %v986
    %988 = vdwg.mxu0
    %989 = vmatprep.subr.mxu0 %v102
    %990 = vmatpush1.msra.mxu0 %v101
    %991 = vmatprep.subr.mxu0 %v111
    %992 = vmatpush1.msra.mxu0 %v110
    %993 = vmatprep.subr.mxu0 %v120
    %994 = vmatpush1.msra.mxu0 %v119
    %995 = vmatprep.subr.mxu0 %v129
    %996 = vmatpush1.msra.mxu0 %v128
    %997 = vmatprep.subr.mxu0 %v138
    %998 = vmatpush1.msra.mxu0 %v137
    %999 = vmatprep.subr.mxu0 %v147
    %1000 = vmatpush1.msra.mxu0 %v146
    %1001 = vmatprep.subr.mxu0 %v156
    %1002 = vmatpush1.msra.mxu0 %v155
    %1003 = vmatprep.subr.mxu0 %v165
    %1004 = vmatpush1.msra.mxu0 %v164
    %1005 = vmatprep.subr.mxu0 %v174
    %1006 = vmatpush1.msra.mxu0 %v173
    %1007 = vmatprep.subr.mxu0 %v183
    %1008 = vmatpush1.msra.mxu0 %v182
    %1009 = vmatprep.subr.mxu0 %v192
    %1010 = vmatpush1.msra.mxu0 %v191
    %1011 = vmatprep.subr.mxu0 %v201
    %1012 = vmatpush1.msra.mxu0 %v200
    %1013 = vmatprep.subr.mxu0 %v210
    %1014 = vmatpush1.msra.mxu0 %v209
    %1015 = vmatprep.subr.mxu0 %v219
    %1016 = vmatpush1.msra.mxu0 %v218
    %1017 = vmatprep.subr.mxu0 %v228
    %1018 = vmatpush1.msra.mxu0 %v227
    %1019 = vmatprep.subr.mxu0 %v237
    %1020 = vmatpush1.msra.mxu0 %v236
    %1021 = vmatprep.subr.mxu0 %v246
    %1022 = vmatpush1.msra.mxu0 %v245
    %1023 = vmatprep.subr.mxu0 %v255
    %1024 = vmatpush1.msra.mxu0 %v254
    %1025 = vmatprep.subr.mxu0 %v264
    %1026 = vmatpush1.msra.mxu0 %v263
    %1027 = vmatprep.subr.mxu0 %v273
    %1028 = vmatpush1.msra.mxu0 %v272
    %1029 = vmatprep.subr.mxu0 %v282
    %1030 = vmatpush1.msra.mxu0 %v281
    %1031 = vmatprep.subr.mxu0 %v291
    %1032 = vmatpush1.msra.mxu0 %v290
    %1033 = vmatprep.subr.mxu0 %v300
    %1034 = vmatpush1.msra.mxu0 %v299
    %1035 = vmatprep.subr.mxu0 %v309
    %1036 = vmatpush1.msra.mxu0 %v308
    %1037 = vmatprep.subr.mxu0 %v318
    %1038 = vmatpush1.msra.mxu0 %v317
    %1039 = vmatprep.subr.mxu0 %v327
    %1040 = vmatpush1.msra.mxu0 %v326
    %1041 = vmatprep.subr.mxu0 %v336
    %1042 = vmatpush1.msra.mxu0 %v335
    %1043 = vmatprep.subr.mxu0 %v345
    %1044 = vmatpush1.msra.mxu0 %v344
    %1045 = vmatprep.subr.mxu0 %v354
    %1046 = vmatpush1.msra.mxu0 %v353
    %1047 = vmatprep.subr.mxu0 %v363
    %1048 = vmatpush1.msra.mxu0 %v362
    %1049 = vmatprep.subr.mxu0 %v372
    %1050 = vmatpush1.msra.mxu0 %v371
    %1051 = vmatprep.subr.mxu0 %v381
    %1052 = vmatpush1.msra.mxu0 %v380
    %1053 = vmatprep.mubr.f32.mxu0 %v88
    %1054 = vmatmul.mubr.f32.gmra.mrb[0].mxu0 %v87
    %v1055 = vpop.f32.mrb[0].mxu0
    %v1056 = vadd.f32 0.0, %v1055
    %v1057 = vpop.f32.mrb[0].mxu0
    %v1058 = vadd.f32 0.0, %v1057
    %1059 = vmatprep.mubr.f32.mxu0 %v91
    %1060 = vmatmul.mubr.f32.gmra.mrb[0].mxu0 %v90
    %v1061 = vpop.f32.mrb[0].mxu0
    %v1062 = vadd.f32 0.0, %v1061
    %v1063 = vpop.f32.mrb[0].mxu0
    %v1064 = vadd.f32 0.0, %v1063
    %1065 = vdwg.mxu0
    %1066 = vmatprep.subr.mxu0 %v390
    %1067 = vmatpush1.msra.mxu0 %v389
    %1068 = vmatprep.subr.mxu0 %v399
    %1069 = vmatpush1.msra.mxu0 %v398
    %1070 = vmatprep.subr.mxu0 %v408
    %1071 = vmatpush1.msra.mxu0 %v407
    %1072 = vmatprep.subr.mxu0 %v417
    %1073 = vmatpush1.msra.mxu0 %v416
    %1074 = vmatprep.subr.mxu0 %v426
    %1075 = vmatpush1.msra.mxu0 %v425
    %1076 = vmatprep.subr.mxu0 %v435
    %1077 = vmatpush1.msra.mxu0 %v434
    %1078 = vmatprep.subr.mxu0 %v444
    %1079 = vmatpush1.msra.mxu0 %v443
    %1080 = vmatprep.subr.mxu0 %v453
    %1081 = vmatpush1.msra.mxu0 %v452
    %1082 = vmatprep.subr.mxu0 %v462
    %1083 = vmatpush1.msra.mxu0 %v461
    %1084 = vmatprep.subr.mxu0 %v471
    %1085 = vmatpush1.msra.mxu0 %v470
    %1086 = vmatprep.subr.mxu0 %v480
    %1087 = vmatpush1.msra.mxu0 %v479
    %1088 = vmatprep.subr.mxu0 %v489
    %1089 = vmatpush1.msra.mxu0 %v488
    %1090 = vmatprep.subr.mxu0 %v498
    %1091 = vmatpush1.msra.mxu0 %v497
    %1092 = vmatprep.subr.mxu0 %v507
    %1093 = vmatpush1.msra.mxu0 %v506
    %1094 = vmatprep.subr.mxu0 %v516
    %1095 = vmatpush1.msra.mxu0 %v515
    %1096 = vmatprep.subr.mxu0 %v525
    %1097 = vmatpush1.msra.mxu0 %v524
    %1098 = vmatprep.subr.mxu0 0.0
    %1099 = vmatpush1.msra.mxu0 0.0
    %1100 = vmatprep.subr.mxu0 0.0
    %1101 = vmatpush1.msra.mxu0 0.0
    %1102 = vmatprep.subr.mxu0 0.0
    %1103 = vmatpush1.msra.mxu0 0.0
    %1104 = vmatprep.subr.mxu0 0.0
    %1105 = vmatpush1.msra.mxu0 0.0
    %1106 = vmatprep.subr.mxu0 0.0
    %1107 = vmatpush1.msra.mxu0 0.0
    %1108 = vmatprep.subr.mxu0 0.0
    %1109 = vmatpush1.msra.mxu0 0.0
    %1110 = vmatprep.subr.mxu0 0.0
    %1111 = vmatpush1.msra.mxu0 0.0
    %1112 = vmatprep.subr.mxu0 0.0
    %1113 = vmatpush1.msra.mxu0 0.0
    %1114 = vmatprep.subr.mxu0 0.0
    %1115 = vmatpush1.msra.mxu0 0.0
    %1116 = vmatprep.subr.mxu0 0.0
    %1117 = vmatpush1.msra.mxu0 0.0
    %1118 = vmatprep.subr.mxu0 0.0
    %1119 = vmatpush1.msra.mxu0 0.0
    %1120 = vmatprep.subr.mxu0 0.0
    %1121 = vmatpush1.msra.mxu0 0.0
    %1122 = vmatprep.subr.mxu0 0.0
    %1123 = vmatpush1.msra.mxu0 0.0
    %1124 = vmatprep.subr.mxu0 0.0
    %1125 = vmatpush1.msra.mxu0 0.0
    %1126 = vmatprep.subr.mxu0 0.0
    %1127 = vmatpush1.msra.mxu0 0.0
    %1128 = vmatprep.subr.mxu0 0.0
    %1129 = vmatpush1.msra.mxu0 0.0
    %1130 = vmatprep.mubr.f32.mxu0 0.0
    %1131 = vmatmul.mubr.f32.gmra.mrb[0].mxu0 %v89
    %v1132 = vpop.f32.mrb[0].mxu0
    %v1133 = vadd.f32 %v1056, %v1132
    %v1134 = vpop.f32.mrb[0].mxu0
    %v1135 = vadd.f32 %v1058, %v1134
    %1136 = vmatprep.mubr.f32.mxu0 0.0
    %1137 = vmatmul.mubr.f32.gmra.mrb[0].mxu0 %v92
    %v1138 = vpop.f32.mrb[0].mxu0
    %v1139 = vadd.f32 %v1062, %v1138
    %v1140 = vpop.f32.mrb[0].mxu0
    %v1141 = vadd.f32 %v1064, %v1140
    %1142 = vdwg.mxu0
    %1143 = vmatprep.subr.mxu0 0.0
    %1144 = vmatpush1.msra.mxu0 %v103
    %1145 = vmatprep.subr.mxu0 0.0
    %1146 = vmatpush1.msra.mxu0 %v112
    %1147 = vmatprep.subr.mxu0 0.0
    %1148 = vmatpush1.msra.mxu0 %v121
    %1149 = vmatprep.subr.mxu0 0.0
    %1150 = vmatpush1.msra.mxu0 %v130
    %1151 = vmatprep.subr.mxu0 0.0
    %1152 = vmatpush1.msra.mxu0 %v139
    %1153 = vmatprep.subr.mxu0 0.0
    %1154 = vmatpush1.msra.mxu0 %v148
    %1155 = vmatprep.subr.mxu0 0.0
    %1156 = vmatpush1.msra.mxu0 %v157
    %1157 = vmatprep.subr.mxu0 0.0
    %1158 = vmatpush1.msra.mxu0 %v166
    %1159 = vmatprep.subr.mxu0 0.0
    %1160 = vmatpush1.msra.mxu0 %v175
    %1161 = vmatprep.subr.mxu0 0.0
    %1162 = vmatpush1.msra.mxu0 %v184
    %1163 = vmatprep.subr.mxu0 0.0
    %1164 = vmatpush1.msra.mxu0 %v193
    %1165 = vmatprep.subr.mxu0 0.0
    %1166 = vmatpush1.msra.mxu0 %v202
    %1167 = vmatprep.subr.mxu0 0.0
    %1168 = vmatpush1.msra.mxu0 %v211
    %1169 = vmatprep.subr.mxu0 0.0
    %1170 = vmatpush1.msra.mxu0 %v220
    %1171 = vmatprep.subr.mxu0 0.0
    %1172 = vmatpush1.msra.mxu0 %v229
    %1173 = vmatprep.subr.mxu0 0.0
    %1174 = vmatpush1.msra.mxu0 %v238
    %1175 = vmatprep.subr.mxu0 0.0
    %1176 = vmatpush1.msra.mxu0 %v247
    %1177 = vmatprep.subr.mxu0 0.0
    %1178 = vmatpush1.msra.mxu0 %v256
    %1179 = vmatprep.subr.mxu0 0.0
    %1180 = vmatpush1.msra.mxu0 %v265
    %1181 = vmatprep.subr.mxu0 0.0
    %1182 = vmatpush1.msra.mxu0 %v274
    %1183 = vmatprep.subr.mxu0 0.0
    %1184 = vmatpush1.msra.mxu0 %v283
    %1185 = vmatprep.subr.mxu0 0.0
    %1186 = vmatpush1.msra.mxu0 %v292
    %1187 = vmatprep.subr.mxu0 0.0
    %1188 = vmatpush1.msra.mxu0 %v301
    %1189 = vmatprep.subr.mxu0 0.0
    %1190 = vmatpush1.msra.mxu0 %v310
    %1191 = vmatprep.subr.mxu0 0.0
    %1192 = vmatpush1.msra.mxu0 %v319
    %1193 = vmatprep.subr.mxu0 0.0
    %1194 = vmatpush1.msra.mxu0 %v328
    %1195 = vmatprep.subr.mxu0 0.0
    %1196 = vmatpush1.msra.mxu0 %v337
    %1197 = vmatprep.subr.mxu0 0.0
    %1198 = vmatpush1.msra.mxu0 %v346
    %1199 = vmatprep.subr.mxu0 0.0
    %1200 = vmatpush1.msra.mxu0 %v355
    %1201 = vmatprep.subr.mxu0 0.0
    %1202 = vmatpush1.msra.mxu0 %v364
    %1203 = vmatprep.subr.mxu0 0.0
    %1204 = vmatpush1.msra.mxu0 %v373
    %1205 = vmatprep.subr.mxu0 0.0
    %1206 = vmatpush1.msra.mxu0 %v382
    %1207 = vmatprep.mubr.f32.mxu0 %v88
    %1208 = vmatmul.mubr.f32.gmra.mrb[0].mxu0 %v87
    %v1209 = vpop.f32.mrb[0].mxu0
    %v1210 = vadd.f32 0.0, %v1209
    %v1211 = vpop.f32.mrb[0].mxu0
    %1212 = vmatprep.mubr.f32.mxu0 %v91
    %1213 = vmatmul.mubr.f32.gmra.mrb[0].mxu0 %v90
    %v1214 = vpop.f32.mrb[0].mxu0
    %v1215 = vadd.f32 0.0, %v1214
    %v1216 = vpop.f32.mrb[0].mxu0
    %1217 = vdwg.mxu0
    %1218 = vmatprep.subr.mxu0 0.0
    %1219 = vmatpush1.msra.mxu0 %v391
    %1220 = vmatprep.subr.mxu0 0.0
    %1221 = vmatpush1.msra.mxu0 %v400
    %1222 = vmatprep.subr.mxu0 0.0
    %1223 = vmatpush1.msra.mxu0 %v409
    %1224 = vmatprep.subr.mxu0 0.0
    %1225 = vmatpush1.msra.mxu0 %v418
    %1226 = vmatprep.subr.mxu0 0.0
    %1227 = vmatpush1.msra.mxu0 %v427
    %1228 = vmatprep.subr.mxu0 0.0
    %1229 = vmatpush1.msra.mxu0 %v436
    %1230 = vmatprep.subr.mxu0 0.0
    %1231 = vmatpush1.msra.mxu0 %v445
    %1232 = vmatprep.subr.mxu0 0.0
    %1233 = vmatpush1.msra.mxu0 %v454
    %1234 = vmatprep.subr.mxu0 0.0
    %1235 = vmatpush1.msra.mxu0 %v463
    %1236 = vmatprep.subr.mxu0 0.0
    %1237 = vmatpush1.msra.mxu0 %v472
    %1238 = vmatprep.subr.mxu0 0.0
    %1239 = vmatpush1.msra.mxu0 %v481
    %1240 = vmatprep.subr.mxu0 0.0
    %1241 = vmatpush1.msra.mxu0 %v490
    %1242 = vmatprep.subr.mxu0 0.0
    %1243 = vmatpush1.msra.mxu0 %v499
    %1244 = vmatprep.subr.mxu0 0.0
    %1245 = vmatpush1.msra.mxu0 %v508
    %1246 = vmatprep.subr.mxu0 0.0
    %1247 = vmatpush1.msra.mxu0 %v517
    %1248 = vmatprep.subr.mxu0 0.0
    %1249 = vmatpush1.msra.mxu0 %v526
    %1250 = vmatprep.subr.mxu0 0.0
    %1251 = vmatpush1.msra.mxu0 0.0
    %1252 = vmatprep.subr.mxu0 0.0
    %1253 = vmatpush1.msra.mxu0 0.0
    %1254 = vmatprep.subr.mxu0 0.0
    %1255 = vmatpush1.msra.mxu0 0.0
    %1256 = vmatprep.subr.mxu0 0.0
    %1257 = vmatpush1.msra.mxu0 0.0
    %1258 = vmatprep.subr.mxu0 0.0
    %1259 = vmatpush1.msra.mxu0 0.0
    %1260 = vmatprep.subr.mxu0 0.0
    %1261 = vmatpush1.msra.mxu0 0.0
    %1262 = vmatprep.subr.mxu0 0.0
    %1263 = vmatpush1.msra.mxu0 0.0
    %1264 = vmatprep.subr.mxu0 0.0
    %1265 = vmatpush1.msra.mxu0 0.0
    %1266 = vmatprep.subr.mxu0 0.0
    %1267 = vmatpush1.msra.mxu0 0.0
    %1268 = vmatprep.subr.mxu0 0.0
    %1269 = vmatpush1.msra.mxu0 0.0
    %1270 = vmatprep.subr.mxu0 0.0
    %1271 = vmatpush1.msra.mxu0 0.0
    %1272 = vmatprep.subr.mxu0 0.0
    %1273 = vmatpush1.msra.mxu0 0.0
    %1274 = vmatprep.subr.mxu0 0.0
    %1275 = vmatpush1.msra.mxu0 0.0
    %1276 = vmatprep.subr.mxu0 0.0
    %1277 = vmatpush1.msra.mxu0 0.0
    %1278 = vmatprep.subr.mxu0 0.0
    %1279 = vmatpush1.msra.mxu0 0.0
    %1280 = vmatprep.subr.mxu0 0.0
    %1281 = vmatpush1.msra.mxu0 0.0
    %1282 = vmatprep.mubr.f32.mxu0 0.0
    %1283 = vmatmul.mubr.f32.gmra.mrb[0].mxu0 %v89
    %v1284 = vpop.f32.mrb[0].mxu0
    %v1285 = vadd.f32 %v1210, %v1284
    %v1286 = vpop.f32.mrb[0].mxu0
    %1287 = vmatprep.mubr.f32.mxu0 0.0
    %1288 = vmatmul.mubr.f32.gmra.mrb[0].mxu0 %v92
    %v1289 = vpop.f32.mrb[0].mxu0
    %v1290 = vadd.f32 %v1215, %v1289
    %v1291 = vpop.f32.mrb[0].mxu0
    %1292 = vdwg.mxu0
    %1293 = vmatprep.subr.mxu0 0.0
    %1294 = vmatpush1.xpose.msra.mxu0 %v827
    %1295 = vmatprep.subr.mxu0 0.0
    %1296 = vmatpush1.xpose.msra.mxu0 %v833
    %1297 = vmatprep.subr.mxu0 0.0
    %1298 = vmatpush1.xpose.msra.mxu0 0.0
    %1299 = vmatprep.subr.mxu0 0.0
    %1300 = vmatpush1.xpose.msra.mxu0 0.0
    %1301 = vmatprep.subr.mxu0 0.0
    %1302 = vmatpush1.xpose.msra.mxu0 0.0
    %1303 = vmatprep.subr.mxu0 0.0
    %1304 = vmatpush1.xpose.msra.mxu0 0.0
    %1305 = vmatprep.subr.mxu0 0.0
    %1306 = vmatpush1.xpose.msra.mxu0 0.0
    %1307 = vmatprep.subr.mxu0 0.0
    %1308 = vmatpush1.xpose.msra.mxu0 0.0
    %1309 = vmatprep.subr.mxu0 0.0
    %1310 = vmatpush1.xpose.msra.mxu0 0.0
    %1311 = vmatprep.subr.mxu0 0.0
    %1312 = vmatpush1.xpose.msra.mxu0 0.0
    %1313 = vmatprep.subr.mxu0 0.0
    %1314 = vmatpush1.xpose.msra.mxu0 0.0
    %1315 = vmatprep.subr.mxu0 0.0
    %1316 = vmatpush1.xpose.msra.mxu0 0.0
    %1317 = vmatprep.subr.mxu0 0.0
    %1318 = vmatpush1.xpose.msra.mxu0 0.0
    %1319 = vmatprep.subr.mxu0 0.0
    %1320 = vmatpush1.xpose.msra.mxu0 0.0
    %1321 = vmatprep.subr.mxu0 0.0
    %1322 = vmatpush1.xpose.msra.mxu0 0.0
    %1323 = vmatprep.subr.mxu0 0.0
    %1324 = vmatpush1.xpose.msra.mxu0 0.0
    %1325 = vmatprep.subr.mxu0 0.0
    %1326 = vmatpush1.xpose.msra.mxu0 0.0
    %1327 = vmatprep.subr.mxu0 0.0
    %1328 = vmatpush1.xpose.msra.mxu0 0.0
    %1329 = vmatprep.subr.mxu0 0.0
    %1330 = vmatpush1.xpose.msra.mxu0 0.0
    %1331 = vmatprep.subr.mxu0 0.0
    %1332 = vmatpush1.xpose.msra.mxu0 0.0
    %1333 = vmatprep.subr.mxu0 0.0
    %1334 = vmatpush1.xpose.msra.mxu0 0.0
    %1335 = vmatprep.subr.mxu0 0.0
    %1336 = vmatpush1.xpose.msra.mxu0 0.0
    %1337 = vmatprep.subr.mxu0 0.0
    %1338 = vmatpush1.xpose.msra.mxu0 0.0
    %1339 = vmatprep.subr.mxu0 0.0
    %1340 = vmatpush1.xpose.msra.mxu0 0.0
    %1341 = vmatprep.subr.mxu0 0.0
    %1342 = vmatpush1.xpose.msra.mxu0 0.0
    %1343 = vmatprep.subr.mxu0 0.0
    %1344 = vmatpush1.xpose.msra.mxu0 0.0
    %1345 = vmatprep.subr.mxu0 0.0
    %1346 = vmatpush1.xpose.msra.mxu0 0.0
    %1347 = vmatprep.subr.mxu0 0.0
    %1348 = vmatpush1.xpose.msra.mxu0 0.0
    %1349 = vmatprep.subr.mxu0 0.0
    %1350 = vmatpush1.xpose.msra.mxu0 0.0
    %1351 = vmatprep.subr.mxu0 0.0
    %1352 = vmatpush1.xpose.msra.mxu0 0.0
    %1353 = vmatprep.subr.mxu0 0.0
    %1354 = vmatpush1.xpose.msra.mxu0 0.0
    %1355 = vmatprep.subr.mxu0 0.0
    %1356 = vmatpush1.xpose.msra.mxu0 0.0
    %1357 = vmatprep.mubr.f32.mxu0 0.0
    %1358 = vmatmul.mubr.f32.gmra.mrb[0].mxu0 %v671
    %v1359 = vpop.f32.mrb[0].mxu0
    %v1360 = vadd.f32 %v93, %v1359
    %v1361 = vpop.f32.mrb[0].mxu0
    %1362 = vmatprep.mubr.f32.mxu0 0.0
    %1363 = vmatmul.mubr.f32.gmra.mrb[0].mxu0 %v677
    %v1364 = vpop.f32.mrb[0].mxu0
    %v1365 = vadd.f32 %v94, %v1364
    %v1366 = vpop.f32.mrb[0].mxu0
    %1367 = vdwg.mxu0
    %vm1368 = vcmask 130048
    %v1369 = vsel %vm1368, %v1360, -inf
    %1370 = vmax.xlane.f32.xlu0 %v1369
    %v1371 = vpop.xlane.xlu0 %1370
    %v1372 = vsel %vm1368, %v1365, -inf
    %1373 = vmax.xlane.f32.xlu0 %v1372
    %v1374 = vpop.xlane.xlu0 %1373
    %v1375 = vsub.f32 %v1360, %v1371
    %v1376 = vsub.f32 %v1365, %v1374
    %v1377 = vmul.f32 %v1375, 1.442695
    %v1378 = vpow.pop %v1377
    %v1379 = vmul.f32 %v1376, 1.442695
    %v1380 = vpow.pop %v1379
    %v1381 = vsel %vm1368, %v1378, 0.0
    %1382 = vadd.xlane.f32.xlu0 %v1381
    %v1383 = vpop.xlane.xlu0 %1382
    %v1384 = vsel %vm1368, %v1380, 0.0
    %1385 = vadd.xlane.f32.xlu0 %v1384
    %v1386 = vpop.xlane.xlu0 %1385
    %v1387 = vrcp.pop %v1383
    %v1388 = vrcp.pop %v1386
    %v1389 = vmul.f32 %v1378, %v1387
    %v1390 = vmul.f32 %v1380, %v1388
    %v1392 = vsel %vm1368, %v1389, 0
    %v1395 = vsel %vm1368, %v1390, 0
    %1397 = vmatprep.subr.mxu0 0.0
    %1398 = vmatpush1.msra.mxu0 %v1133
    %1399 = vmatprep.subr.mxu0 0.0
    %1400 = vmatpush1.msra.mxu0 %v1139
    %1401 = vmatprep.subr.mxu0 0.0
    %1402 = vmatpush1.msra.mxu0 0.0
    %1403 = vmatprep.subr.mxu0 0.0
    %1404 = vmatpush1.msra.mxu0 0.0
    %1405 = vmatprep.subr.mxu0 0.0
    %1406 = vmatpush1.msra.mxu0 0.0
    %1407 = vmatprep.subr.mxu0 0.0
    %1408 = vmatpush1.msra.mxu0 0.0
    %1409 = vmatprep.subr.mxu0 0.0
    %1410 = vmatpush1.msra.mxu0 0.0
    %1411 = vmatprep.subr.mxu0 0.0
    %1412 = vmatpush1.msra.mxu0 0.0
    %1413 = vmatprep.subr.mxu0 0.0
    %1414 = vmatpush1.msra.mxu0 0.0
    %1415 = vmatprep.subr.mxu0 0.0
    %1416 = vmatpush1.msra.mxu0 0.0
    %1417 = vmatprep.subr.mxu0 0.0
    %1418 = vmatpush1.msra.mxu0 0.0
    %1419 = vmatprep.subr.mxu0 0.0
    %1420 = vmatpush1.msra.mxu0 0.0
    %1421 = vmatprep.subr.mxu0 0.0
    %1422 = vmatpush1.msra.mxu0 0.0
    %1423 = vmatprep.subr.mxu0 0.0
    %1424 = vmatpush1.msra.mxu0 0.0
    %1425 = vmatprep.subr.mxu0 0.0
    %1426 = vmatpush1.msra.mxu0 0.0
    %1427 = vmatprep.subr.mxu0 0.0
    %1428 = vmatpush1.msra.mxu0 0.0
    %1429 = vmatprep.subr.mxu0 0.0
    %1430 = vmatpush1.msra.mxu0 0.0
    %1431 = vmatprep.subr.mxu0 0.0
    %1432 = vmatpush1.msra.mxu0 0.0
    %1433 = vmatprep.subr.mxu0 0.0
    %1434 = vmatpush1.msra.mxu0 0.0
    %1435 = vmatprep.subr.mxu0 0.0
    %1436 = vmatpush1.msra.mxu0 0.0
    %1437 = vmatprep.subr.mxu0 0.0
    %1438 = vmatpush1.msra.mxu0 0.0
    %1439 = vmatprep.subr.mxu0 0.0
    %1440 = vmatpush1.msra.mxu0 0.0
    %1441 = vmatprep.subr.mxu0 0.0
    %1442 = vmatpush1.msra.mxu0 0.0
    %1443 = vmatprep.subr.mxu0 0.0
    %1444 = vmatpush1.msra.mxu0 0.0
    %1445 = vmatprep.subr.mxu0 0.0
    %1446 = vmatpush1.msra.mxu0 0.0
    %1447 = vmatprep.subr.mxu0 0.0
    %1448 = vmatpush1.msra.mxu0 0.0
    %1449 = vmatprep.subr.mxu0 0.0
    %1450 = vmatpush1.msra.mxu0 0.0
    %1451 = vmatprep.subr.mxu0 0.0
    %1452 = vmatpush1.msra.mxu0 0.0
    %1453 = vmatprep.subr.mxu0 0.0
    %1454 = vmatpush1.msra.mxu0 0.0
    %1455 = vmatprep.subr.mxu0 0.0
    %1456 = vmatpush1.msra.mxu0 0.0
    %1457 = vmatprep.subr.mxu0 0.0
    %1458 = vmatpush1.msra.mxu0 0.0
    %1459 = vmatprep.subr.mxu0 0.0
    %1460 = vmatpush1.msra.mxu0 0.0
    %1461 = vmatprep.mubr.f32.mxu0 0.0
    %1462 = vmatmul.mubr.f32.gmra.mrb[0].mxu0 %v1392
    %v1463 = vpop.f32.mrb[0].mxu0
    %v1464 = vadd.f32 0.0, %v1463
    %v1465 = vpop.f32.mrb[0].mxu0
    %1466 = vmatprep.mubr.f32.mxu0 0.0
    %1467 = vmatmul.mubr.f32.gmra.mrb[0].mxu0 %v1395
    %v1468 = vpop.f32.mrb[0].mxu0
    %v1469 = vadd.f32 0.0, %v1468
    %v1470 = vpop.f32.mrb[0].mxu0
    %1471 = vdwg.mxu0
    %1472 = vmatprep.subr.mxu0 0.0
    %1473 = vmatpush1.xpose.msra.mxu0 %v979
    %1474 = vmatprep.subr.mxu0 0.0
    %1475 = vmatpush1.xpose.msra.mxu0 %v985
    %1476 = vmatprep.subr.mxu0 0.0
    %1477 = vmatpush1.xpose.msra.mxu0 0.0
    %1478 = vmatprep.subr.mxu0 0.0
    %1479 = vmatpush1.xpose.msra.mxu0 0.0
    %1480 = vmatprep.subr.mxu0 0.0
    %1481 = vmatpush1.xpose.msra.mxu0 0.0
    %1482 = vmatprep.subr.mxu0 0.0
    %1483 = vmatpush1.xpose.msra.mxu0 0.0
    %1484 = vmatprep.subr.mxu0 0.0
    %1485 = vmatpush1.xpose.msra.mxu0 0.0
    %1486 = vmatprep.subr.mxu0 0.0
    %1487 = vmatpush1.xpose.msra.mxu0 0.0
    %1488 = vmatprep.subr.mxu0 0.0
    %1489 = vmatpush1.xpose.msra.mxu0 0.0
    %1490 = vmatprep.subr.mxu0 0.0
    %1491 = vmatpush1.xpose.msra.mxu0 0.0
    %1492 = vmatprep.subr.mxu0 0.0
    %1493 = vmatpush1.xpose.msra.mxu0 0.0
    %1494 = vmatprep.subr.mxu0 0.0
    %1495 = vmatpush1.xpose.msra.mxu0 0.0
    %1496 = vmatprep.subr.mxu0 0.0
    %1497 = vmatpush1.xpose.msra.mxu0 0.0
    %1498 = vmatprep.subr.mxu0 0.0
    %1499 = vmatpush1.xpose.msra.mxu0 0.0
    %1500 = vmatprep.subr.mxu0 0.0
    %1501 = vmatpush1.xpose.msra.mxu0 0.0
    %1502 = vmatprep.subr.mxu0 0.0
    %1503 = vmatpush1.xpose.msra.mxu0 0.0
    %1504 = vmatprep.subr.mxu0 0.0
    %1505 = vmatpush1.xpose.msra.mxu0 0.0
    %1506 = vmatprep.subr.mxu0 0.0
    %1507 = vmatpush1.xpose.msra.mxu0 0.0
    %1508 = vmatprep.subr.mxu0 0.0
    %1509 = vmatpush1.xpose.msra.mxu0 0.0
    %1510 = vmatprep.subr.mxu0 0.0
    %1511 = vmatpush1.xpose.msra.mxu0 0.0
    %1512 = vmatprep.subr.mxu0 0.0
    %1513 = vmatpush1.xpose.msra.mxu0 0.0
    %1514 = vmatprep.subr.mxu0 0.0
    %1515 = vmatpush1.xpose.msra.mxu0 0.0
    %1516 = vmatprep.subr.mxu0 0.0
    %1517 = vmatpush1.xpose.msra.mxu0 0.0
    %1518 = vmatprep.subr.mxu0 0.0
    %1519 = vmatpush1.xpose.msra.mxu0 0.0
    %1520 = vmatprep.subr.mxu0 0.0
    %1521 = vmatpush1.xpose.msra.mxu0 0.0
    %1522 = vmatprep.subr.mxu0 0.0
    %1523 = vmatpush1.xpose.msra.mxu0 0.0
    %1524 = vmatprep.subr.mxu0 0.0
    %1525 = vmatpush1.xpose.msra.mxu0 0.0
    %1526 = vmatprep.subr.mxu0 0.0
    %1527 = vmatpush1.xpose.msra.mxu0 0.0
    %1528 = vmatprep.subr.mxu0 0.0
    %1529 = vmatpush1.xpose.msra.mxu0 0.0
    %1530 = vmatprep.subr.mxu0 0.0
    %1531 = vmatpush1.xpose.msra.mxu0 0.0
    %1532 = vmatprep.subr.mxu0 0.0
    %1533 = vmatpush1.xpose.msra.mxu0 0.0
    %1534 = vmatprep.subr.mxu0 0.0
    %1535 = vmatpush1.xpose.msra.mxu0 0.0
    %1536 = vmatprep.mubr.f32.mxu0 0.0
    %1537 = vmatmul.mubr.f32.gmra.mrb[0].mxu0 %v673
    %v1538 = vpop.f32.mrb[0].mxu0
    %v1539 = vadd.f32 %v93, %v1538
    %v1540 = vpop.f32.mrb[0].mxu0
    %1541 = vmatprep.mubr.f32.mxu0 0.0
    %1542 = vmatmul.mubr.f32.gmra.mrb[0].mxu0 %v679
    %v1543 = vpop.f32.mrb[0].mxu0
    %v1544 = vadd.f32 %v94, %v1543
    %v1545 = vpop.f32.mrb[0].mxu0
    %1546 = vdwg.mxu0
    %v1547 = vsel %vm1368, %v1539, -inf
    %1548 = vmax.xlane.f32.xlu0 %v1547
    %v1549 = vpop.xlane.xlu0 %1548
    %v1550 = vsel %vm1368, %v1544, -inf
    %1551 = vmax.xlane.f32.xlu0 %v1550
    %v1552 = vpop.xlane.xlu0 %1551
    %v1553 = vsub.f32 %v1539, %v1549
    %v1554 = vsub.f32 %v1544, %v1552
    %v1555 = vmul.f32 %v1553, 1.442695
    %v1556 = vpow.pop %v1555
    %v1557 = vmul.f32 %v1554, 1.442695
    %v1558 = vpow.pop %v1557
    %v1559 = vsel %vm1368, %v1556, 0.0
    %1560 = vadd.xlane.f32.xlu0 %v1559
    %v1561 = vpop.xlane.xlu0 %1560
    %v1562 = vsel %vm1368, %v1558, 0.0
    %1563 = vadd.xlane.f32.xlu0 %v1562
    %v1564 = vpop.xlane.xlu0 %1563
    %v1565 = vrcp.pop %v1561
    %v1566 = vrcp.pop %v1564
    %v1567 = vmul.f32 %v1556, %v1565
    %v1568 = vmul.f32 %v1558, %v1566
    %v1570 = vsel %vm1368, %v1567, 0
    %v1573 = vsel %vm1368, %v1568, 0
    %1575 = vmatprep.subr.mxu0 0.0
    %1576 = vmatpush1.msra.mxu0 %v1135
    %1577 = vmatprep.subr.mxu0 0.0
    %1578 = vmatpush1.msra.mxu0 %v1141
    %1579 = vmatprep.subr.mxu0 0.0
    %1580 = vmatpush1.msra.mxu0 0.0
    %1581 = vmatprep.subr.mxu0 0.0
    %1582 = vmatpush1.msra.mxu0 0.0
    %1583 = vmatprep.subr.mxu0 0.0
    %1584 = vmatpush1.msra.mxu0 0.0
    %1585 = vmatprep.subr.mxu0 0.0
    %1586 = vmatpush1.msra.mxu0 0.0
    %1587 = vmatprep.subr.mxu0 0.0
    %1588 = vmatpush1.msra.mxu0 0.0
    %1589 = vmatprep.subr.mxu0 0.0
    %1590 = vmatpush1.msra.mxu0 0.0
    %1591 = vmatprep.subr.mxu0 0.0
    %1592 = vmatpush1.msra.mxu0 0.0
    %1593 = vmatprep.subr.mxu0 0.0
    %1594 = vmatpush1.msra.mxu0 0.0
    %1595 = vmatprep.subr.mxu0 0.0
    %1596 = vmatpush1.msra.mxu0 0.0
    %1597 = vmatprep.subr.mxu0 0.0
    %1598 = vmatpush1.msra.mxu0 0.0
    %1599 = vmatprep.subr.mxu0 0.0
    %1600 = vmatpush1.msra.mxu0 0.0
    %1601 = vmatprep.subr.mxu0 0.0
    %1602 = vmatpush1.msra.mxu0 0.0
    %1603 = vmatprep.subr.mxu0 0.0
    %1604 = vmatpush1.msra.mxu0 0.0
    %1605 = vmatprep.subr.mxu0 0.0
    %1606 = vmatpush1.msra.mxu0 0.0
    %1607 = vmatprep.subr.mxu0 0.0
    %1608 = vmatpush1.msra.mxu0 0.0
    %1609 = vmatprep.subr.mxu0 0.0
    %1610 = vmatpush1.msra.mxu0 0.0
    %1611 = vmatprep.subr.mxu0 0.0
    %1612 = vmatpush1.msra.mxu0 0.0
    %1613 = vmatprep.subr.mxu0 0.0
    %1614 = vmatpush1.msra.mxu0 0.0
    %1615 = vmatprep.subr.mxu0 0.0
    %1616 = vmatpush1.msra.mxu0 0.0
    %1617 = vmatprep.subr.mxu0 0.0
    %1618 = vmatpush1.msra.mxu0 0.0
    %1619 = vmatprep.subr.mxu0 0.0
    %1620 = vmatpush1.msra.mxu0 0.0
    %1621 = vmatprep.subr.mxu0 0.0
    %1622 = vmatpush1.msra.mxu0 0.0
    %1623 = vmatprep.subr.mxu0 0.0
    %1624 = vmatpush1.msra.mxu0 0.0
    %1625 = vmatprep.subr.mxu0 0.0
    %1626 = vmatpush1.msra.mxu0 0.0
    %1627 = vmatprep.subr.mxu0 0.0
    %1628 = vmatpush1.msra.mxu0 0.0
    %1629 = vmatprep.subr.mxu0 0.0
    %1630 = vmatpush1.msra.mxu0 0.0
    %1631 = vmatprep.subr.mxu0 0.0
    %1632 = vmatpush1.msra.mxu0 0.0
    %1633 = vmatprep.subr.mxu0 0.0
    %1634 = vmatpush1.msra.mxu0 0.0
    %1635 = vmatprep.subr.mxu0 0.0
    %1636 = vmatpush1.msra.mxu0 0.0
    %1637 = vmatprep.subr.mxu0 0.0
    %1638 = vmatpush1.msra.mxu0 0.0
    %1639 = vmatprep.mubr.f32.mxu0 0.0
    %1640 = vmatmul.mubr.f32.gmra.mrb[0].mxu0 %v1570
    %v1641 = vpop.f32.mrb[0].mxu0
    %v1642 = vadd.f32 0.0, %v1641
    %v1643 = vpop.f32.mrb[0].mxu0
    %1644 = vmatprep.mubr.f32.mxu0 0.0
    %1645 = vmatmul.mubr.f32.gmra.mrb[0].mxu0 %v1573
    %v1646 = vpop.f32.mrb[0].mxu0
    %v1647 = vadd.f32 0.0, %v1646
    %v1648 = vpop.f32.mrb[0].mxu0
    %1649 = vdwg.mxu0
    %1650 = vmatprep.subr.mxu0 0.0
    %1651 = vmatpush1.xpose.msra.mxu0 %v981
    %1652 = vmatprep.subr.mxu0 0.0
    %1653 = vmatpush1.xpose.msra.mxu0 %v987
    %1654 = vmatprep.subr.mxu0 0.0
    %1655 = vmatpush1.xpose.msra.mxu0 0.0
    %1656 = vmatprep.subr.mxu0 0.0
    %1657 = vmatpush1.xpose.msra.mxu0 0.0
    %1658 = vmatprep.subr.mxu0 0.0
    %1659 = vmatpush1.xpose.msra.mxu0 0.0
    %1660 = vmatprep.subr.mxu0 0.0
    %1661 = vmatpush1.xpose.msra.mxu0 0.0
    %1662 = vmatprep.subr.mxu0 0.0
    %1663 = vmatpush1.xpose.msra.mxu0 0.0
    %1664 = vmatprep.subr.mxu0 0.0
    %1665 = vmatpush1.xpose.msra.mxu0 0.0
    %1666 = vmatprep.subr.mxu0 0.0
    %1667 = vmatpush1.xpose.msra.mxu0 0.0
    %1668 = vmatprep.subr.mxu0 0.0
    %1669 = vmatpush1.xpose.msra.mxu0 0.0
    %1670 = vmatprep.subr.mxu0 0.0
    %1671 = vmatpush1.xpose.msra.mxu0 0.0
    %1672 = vmatprep.subr.mxu0 0.0
    %1673 = vmatpush1.xpose.msra.mxu0 0.0
    %1674 = vmatprep.subr.mxu0 0.0
    %1675 = vmatpush1.xpose.msra.mxu0 0.0
    %1676 = vmatprep.subr.mxu0 0.0
    %1677 = vmatpush1.xpose.msra.mxu0 0.0
    %1678 = vmatprep.subr.mxu0 0.0
    %1679 = vmatpush1.xpose.msra.mxu0 0.0
    %1680 = vmatprep.subr.mxu0 0.0
    %1681 = vmatpush1.xpose.msra.mxu0 0.0
    %1682 = vmatprep.subr.mxu0 0.0
    %1683 = vmatpush1.xpose.msra.mxu0 0.0
    %1684 = vmatprep.subr.mxu0 0.0
    %1685 = vmatpush1.xpose.msra.mxu0 0.0
    %1686 = vmatprep.subr.mxu0 0.0
    %1687 = vmatpush1.xpose.msra.mxu0 0.0
    %1688 = vmatprep.subr.mxu0 0.0
    %1689 = vmatpush1.xpose.msra.mxu0 0.0
    %1690 = vmatprep.subr.mxu0 0.0
    %1691 = vmatpush1.xpose.msra.mxu0 0.0
    %1692 = vmatprep.subr.mxu0 0.0
    %1693 = vmatpush1.xpose.msra.mxu0 0.0
    %1694 = vmatprep.subr.mxu0 0.0
    %1695 = vmatpush1.xpose.msra.mxu0 0.0
    %1696 = vmatprep.subr.mxu0 0.0
    %1697 = vmatpush1.xpose.msra.mxu0 0.0
    %1698 = vmatprep.subr.mxu0 0.0
    %1699 = vmatpush1.xpose.msra.mxu0 0.0
    %1700 = vmatprep.subr.mxu0 0.0
    %1701 = vmatpush1.xpose.msra.mxu0 0.0
    %1702 = vmatprep.subr.mxu0 0.0
    %1703 = vmatpush1.xpose.msra.mxu0 0.0
    %1704 = vmatprep.subr.mxu0 0.0
    %1705 = vmatpush1.xpose.msra.mxu0 0.0
    %1706 = vmatprep.subr.mxu0 0.0
    %1707 = vmatpush1.xpose.msra.mxu0 0.0
    %1708 = vmatprep.subr.mxu0 0.0
    %1709 = vmatpush1.xpose.msra.mxu0 0.0
    %1710 = vmatprep.subr.mxu0 0.0
    %1711 = vmatpush1.xpose.msra.mxu0 0.0
    %1712 = vmatprep.subr.mxu0 0.0
    %1713 = vmatpush1.xpose.msra.mxu0 0.0
    %1714 = vmatprep.mubr.f32.mxu0 0.0
    %1715 = vmatmul.mubr.f32.gmra.mrb[0].mxu0 %v825
    %v1716 = vpop.f32.mrb[0].mxu0
    %v1717 = vadd.f32 %v93, %v1716
    %v1718 = vpop.f32.mrb[0].mxu0
    %1719 = vmatprep.mubr.f32.mxu0 0.0
    %1720 = vmatmul.mubr.f32.gmra.mrb[0].mxu0 %v831
    %v1721 = vpop.f32.mrb[0].mxu0
    %v1722 = vadd.f32 %v94, %v1721
    %v1723 = vpop.f32.mrb[0].mxu0
    %1724 = vdwg.mxu0
    %v1725 = vsel %vm1368, %v1717, -inf
    %1726 = vmax.xlane.f32.xlu0 %v1725
    %v1727 = vpop.xlane.xlu0 %1726
    %v1728 = vsel %vm1368, %v1722, -inf
    %1729 = vmax.xlane.f32.xlu0 %v1728
    %v1730 = vpop.xlane.xlu0 %1729
    %v1731 = vsub.f32 %v1717, %v1727
    %v1732 = vsub.f32 %v1722, %v1730
    %v1733 = vmul.f32 %v1731, 1.442695
    %v1734 = vpow.pop %v1733
    %v1735 = vmul.f32 %v1732, 1.442695
    %v1736 = vpow.pop %v1735
    %v1737 = vsel %vm1368, %v1734, 0.0
    %1738 = vadd.xlane.f32.xlu0 %v1737
    %v1739 = vpop.xlane.xlu0 %1738
    %v1740 = vsel %vm1368, %v1736, 0.0
    %1741 = vadd.xlane.f32.xlu0 %v1740
    %v1742 = vpop.xlane.xlu0 %1741
    %v1743 = vrcp.pop %v1739
    %v1744 = vrcp.pop %v1742
    %v1745 = vmul.f32 %v1734, %v1743
    %v1746 = vmul.f32 %v1736, %v1744
    %v1748 = vsel %vm1368, %v1745, 0
    %v1751 = vsel %vm1368, %v1746, 0
    %1753 = vmatprep.subr.mxu0 0.0
    %1754 = vmatpush1.msra.mxu0 %v1285
    %1755 = vmatprep.subr.mxu0 0.0
    %1756 = vmatpush1.msra.mxu0 %v1290
    %1757 = vmatprep.subr.mxu0 0.0
    %1758 = vmatpush1.msra.mxu0 0.0
    %1759 = vmatprep.subr.mxu0 0.0
    %1760 = vmatpush1.msra.mxu0 0.0
    %1761 = vmatprep.subr.mxu0 0.0
    %1762 = vmatpush1.msra.mxu0 0.0
    %1763 = vmatprep.subr.mxu0 0.0
    %1764 = vmatpush1.msra.mxu0 0.0
    %1765 = vmatprep.subr.mxu0 0.0
    %1766 = vmatpush1.msra.mxu0 0.0
    %1767 = vmatprep.subr.mxu0 0.0
    %1768 = vmatpush1.msra.mxu0 0.0
    %1769 = vmatprep.subr.mxu0 0.0
    %1770 = vmatpush1.msra.mxu0 0.0
    %1771 = vmatprep.subr.mxu0 0.0
    %1772 = vmatpush1.msra.mxu0 0.0
    %1773 = vmatprep.subr.mxu0 0.0
    %1774 = vmatpush1.msra.mxu0 0.0
    %1775 = vmatprep.subr.mxu0 0.0
    %1776 = vmatpush1.msra.mxu0 0.0
    %1777 = vmatprep.subr.mxu0 0.0
    %1778 = vmatpush1.msra.mxu0 0.0
    %1779 = vmatprep.subr.mxu0 0.0
    %1780 = vmatpush1.msra.mxu0 0.0
    %1781 = vmatprep.subr.mxu0 0.0
    %1782 = vmatpush1.msra.mxu0 0.0
    %1783 = vmatprep.subr.mxu0 0.0
    %1784 = vmatpush1.msra.mxu0 0.0
    %1785 = vmatprep.subr.mxu0 0.0
    %1786 = vmatpush1.msra.mxu0 0.0
    %1787 = vmatprep.subr.mxu0 0.0
    %1788 = vmatpush1.msra.mxu0 0.0
    %1789 = vmatprep.subr.mxu0 0.0
    %1790 = vmatpush1.msra.mxu0 0.0
    %1791 = vmatprep.subr.mxu0 0.0
    %1792 = vmatpush1.msra.mxu0 0.0
    %1793 = vmatprep.subr.mxu0 0.0
    %1794 = vmatpush1.msra.mxu0 0.0
    %1795 = vmatprep.subr.mxu0 0.0
    %1796 = vmatpush1.msra.mxu0 0.0
    %1797 = vmatprep.subr.mxu0 0.0
    %1798 = vmatpush1.msra.mxu0 0.0
    %1799 = vmatprep.subr.mxu0 0.0
    %1800 = vmatpush1.msra.mxu0 0.0
    %1801 = vmatprep.subr.mxu0 0.0
    %1802 = vmatpush1.msra.mxu0 0.0
    %1803 = vmatprep.subr.mxu0 0.0
    %1804 = vmatpush1.msra.mxu0 0.0
    %1805 = vmatprep.subr.mxu0 0.0
    %1806 = vmatpush1.msra.mxu0 0.0
    %1807 = vmatprep.subr.mxu0 0.0
    %1808 = vmatpush1.msra.mxu0 0.0
    %1809 = vmatprep.subr.mxu0 0.0
    %1810 = vmatpush1.msra.mxu0 0.0
    %1811 = vmatprep.subr.mxu0 0.0
    %1812 = vmatpush1.msra.mxu0 0.0
    %1813 = vmatprep.subr.mxu0 0.0
    %1814 = vmatpush1.msra.mxu0 0.0
    %1815 = vmatprep.subr.mxu0 0.0
    %1816 = vmatpush1.msra.mxu0 0.0
    %1817 = vmatprep.mubr.f32.mxu0 0.0
    %1818 = vmatmul.mubr.f32.gmra.mrb[0].mxu0 %v1748
    %v1819 = vpop.f32.mrb[0].mxu0
    %v1820 = vadd.f32 0.0, %v1819
    %v1821 = vpop.f32.mrb[0].mxu0
    %1822 = vmatprep.mubr.f32.mxu0 0.0
    %1823 = vmatmul.mubr.f32.gmra.mrb[0].mxu0 %v1751
    %v1824 = vpop.f32.mrb[0].mxu0
    %v1825 = vadd.f32 0.0, %v1824
    %v1826 = vpop.f32.mrb[0].mxu0
    %1827 = vdwg.mxu0
    %v1828 = vld [vmem:[#allocation8] sm:$0xff]
    %v1829 = vld [vmem:[#allocation8 + $0x8] sm:$0xff]
    %v1830 = vld [vmem:[#allocation8 + $0x10] sm:$0xff]
    %v1831 = vld [vmem:[#allocation8 + $0x18] sm:$0xff]
    %v1832 = vld [vmem:[#allocation8 + $0x20] sm:$0xff]
    %v1833 = vld [vmem:[#allocation8 + $0x28] sm:$0xff]
    %v1834 = vld [vmem:[#allocation8 + $0x30] sm:$0xff]
    %v1835 = vld [vmem:[#allocation8 + $0x38] sm:$0xff]
    %v1836 = vld [vmem:[#allocation8 + $0x40] sm:$0xff]
    %v1837 = vld [vmem:[#allocation8 + $0x48] sm:$0xff]
    %v1838 = vld [vmem:[#allocation8 + $0x50] sm:$0xff]
    %v1839 = vld [vmem:[#allocation8 + $0x58] sm:$0xff]
    %v1840 = vld [vmem:[#allocation8 + $0x60] sm:$0xff]
    %v1841 = vld [vmem:[#allocation8 + $0x68] sm:$0xff]
    %v1842 = vld [vmem:[#allocation8 + $0x70] sm:$0xff]
    %v1843 = vld [vmem:[#allocation8 + $0x78] sm:$0xff]
    %v1844 = vld [vmem:[#allocation8 + $0x80] sm:$0xff]
    %v1845 = vld [vmem:[#allocation8 + $0x88] sm:$0xff]
    %v1846 = vld [vmem:[#allocation8 + $0x90] sm:$0xff]
    %v1847 = vld [vmem:[#allocation8 + $0x98] sm:$0xff]
    %v1848 = vld [vmem:[#allocation8 + $0xa0] sm:$0xff]
    %v1849 = vld [vmem:[#allocation8 + $0xa8] sm:$0xff]
    %v1850 = vld [vmem:[#allocation8 + $0xb0] sm:$0xff]
    %v1851 = vld [vmem:[#allocation8 + $0xb8] sm:$0xff]
    %v1852 = vld [vmem:[#allocation8 + $0xc0] sm:$0xff]
    %v1853 = vld [vmem:[#allocation8 + $0xc8] sm:$0xff]
    %v1854 = vld [vmem:[#allocation8 + $0xd0] sm:$0xff]
    %v1855 = vld [vmem:[#allocation8 + $0xd8] sm:$0xff]
    %v1856 = vld [vmem:[#allocation8 + $0xe0] sm:$0xff]
    %v1857 = vld [vmem:[#allocation8 + $0xe8] sm:$0xff]
    %v1858 = vld [vmem:[#allocation8 + $0xf0] sm:$0xff]
    %v1859 = vld [vmem:[#allocation8 + $0xf8] sm:$0xff]
    %v1860 = vld [vmem:[#allocation8 + $0x100] sm:$0xff]
    %v1861 = vld [vmem:[#allocation8 + $0x108] sm:$0xff]
    %v1862 = vld [vmem:[#allocation8 + $0x110] sm:$0xff]
    %v1863 = vld [vmem:[#allocation8 + $0x118] sm:$0xff]
    %v1864 = vld [vmem:[#allocation8 + $0x120] sm:$0xff]
    %v1865 = vld [vmem:[#allocation8 + $0x128] sm:$0xff]
    %v1866 = vld [vmem:[#allocation8 + $0x130] sm:$0xff]
    %v1867 = vld [vmem:[#allocation8 + $0x138] sm:$0xff]
    %v1868 = vld [vmem:[#allocation8 + $0x140] sm:$0xff]
    %v1869 = vld [vmem:[#allocation8 + $0x148] sm:$0xff]
    %v1870 = vld [vmem:[#allocation8 + $0x150] sm:$0xff]
    %v1871 = vld [vmem:[#allocation8 + $0x158] sm:$0xff]
    %v1872 = vld [vmem:[#allocation8 + $0x160] sm:$0xff]
    %v1873 = vld [vmem:[#allocation8 + $0x168] sm:$0xff]
    %v1874 = vld [vmem:[#allocation8 + $0x170] sm:$0xff]
    %v1875 = vld [vmem:[#allocation8 + $0x178] sm:$0xff]
    %v1876 = vld [vmem:[#allocation8 + $0x180] sm:$0xff]
    %v1877 = vld [vmem:[#allocation8 + $0x188] sm:$0xff]
    %v1878 = vld [vmem:[#allocation8 + $0x190] sm:$0xff]
    %v1879 = vld [vmem:[#allocation8 + $0x198] sm:$0xff]
    %v1880 = vld [vmem:[#allocation8 + $0x1a0] sm:$0xff]
    %v1881 = vld [vmem:[#allocation8 + $0x1a8] sm:$0xff]
    %v1882 = vld [vmem:[#allocation8 + $0x1b0] sm:$0xff]
    %v1883 = vld [vmem:[#allocation8 + $0x1b8] sm:$0xff]
    %v1884 = vld [vmem:[#allocation8 + $0x1c0] sm:$0xff]
    %v1885 = vld [vmem:[#allocation8 + $0x1c8] sm:$0xff]
    %v1886 = vld [vmem:[#allocation8 + $0x1d0] sm:$0xff]
    %v1887 = vld [vmem:[#allocation8 + $0x1d8] sm:$0xff]
    %v1888 = vld [vmem:[#allocation8 + $0x1e0] sm:$0xff]
    %v1889 = vld [vmem:[#allocation8 + $0x1e8] sm:$0xff]
    %v1890 = vld [vmem:[#allocation8 + $0x1f0] sm:$0xff]
    %v1891 = vld [vmem:[#allocation8 + $0x1f8] sm:$0xff]
    %v1892 = vld [vmem:[#allocation8 + $0x200] sm:$0xff]
    %v1893 = vld [vmem:[#allocation8 + $0x208] sm:$0xff]
    %v1894 = vld [vmem:[#allocation8 + $0x210] sm:$0xff]
    %v1895 = vld [vmem:[#allocation8 + $0x218] sm:$0xff]
    %v1896 = vld [vmem:[#allocation8 + $0x220] sm:$0xff]
    %v1897 = vld [vmem:[#allocation8 + $0x228] sm:$0xff]
    %v1898 = vld [vmem:[#allocation8 + $0x230] sm:$0xff]
    %v1899 = vld [vmem:[#allocation8 + $0x238] sm:$0xff]
    %v1900 = vld [vmem:[#allocation8 + $0x240] sm:$0xff]
    %v1901 = vld [vmem:[#allocation8 + $0x248] sm:$0xff]
    %v1902 = vld [vmem:[#allocation8 + $0x250] sm:$0xff]
    %v1903 = vld [vmem:[#allocation8 + $0x258] sm:$0xff]
    %v1904 = vld [vmem:[#allocation8 + $0x260] sm:$0xff]
    %v1905 = vld [vmem:[#allocation8 + $0x268] sm:$0xff]
    %v1906 = vld [vmem:[#allocation8 + $0x270] sm:$0xff]
    %v1907 = vld [vmem:[#allocation8 + $0x278] sm:$0xff]
    %v1908 = vld [vmem:[#allocation8 + $0x280] sm:$0xff]
    %v1909 = vld [vmem:[#allocation8 + $0x288] sm:$0xff]
    %v1910 = vld [vmem:[#allocation8 + $0x290] sm:$0xff]
    %v1911 = vld [vmem:[#allocation8 + $0x298] sm:$0xff]
    %v1912 = vld [vmem:[#allocation8 + $0x2a0] sm:$0xff]
    %v1913 = vld [vmem:[#allocation8 + $0x2a8] sm:$0xff]
    %v1914 = vld [vmem:[#allocation8 + $0x2b0] sm:$0xff]
    %v1915 = vld [vmem:[#allocation8 + $0x2b8] sm:$0xff]
    %v1916 = vld [vmem:[#allocation8 + $0x2c0] sm:$0xff]
    %v1917 = vld [vmem:[#allocation8 + $0x2c8] sm:$0xff]
    %v1918 = vld [vmem:[#allocation8 + $0x2d0] sm:$0xff]
    %v1919 = vld [vmem:[#allocation8 + $0x2d8] sm:$0xff]
    %v1920 = vld [vmem:[#allocation8 + $0x2e0] sm:$0xff]
    %v1921 = vld [vmem:[#allocation8 + $0x2e8] sm:$0xff]
    %v1922 = vld [vmem:[#allocation8 + $0x2f0] sm:$0xff]
    %v1923 = vld [vmem:[#allocation8 + $0x2f8] sm:$0xff]
    %v1924 = vld [vmem:[#allocation8 + $0x300] sm:$0xff]
    %v1925 = vld [vmem:[#allocation8 + $0x308] sm:$0xff]
    %v1926 = vld [vmem:[#allocation8 + $0x310] sm:$0xff]
    %v1927 = vld [vmem:[#allocation8 + $0x318] sm:$0xff]
    %v1928 = vld [vmem:[#allocation8 + $0x320] sm:$0xff]
    %v1929 = vld [vmem:[#allocation8 + $0x328] sm:$0xff]
    %v1930 = vld [vmem:[#allocation8 + $0x330] sm:$0xff]
    %v1931 = vld [vmem:[#allocation8 + $0x338] sm:$0xff]
    %v1932 = vld [vmem:[#allocation8 + $0x340] sm:$0xff]
    %v1933 = vld [vmem:[#allocation8 + $0x348] sm:$0xff]
    %v1934 = vld [vmem:[#allocation8 + $0x350] sm:$0xff]
    %v1935 = vld [vmem:[#allocation8 + $0x358] sm:$0xff]
    %v1936 = vld [vmem:[#allocation8 + $0x360] sm:$0xff]
    %v1937 = vld [vmem:[#allocation8 + $0x368] sm:$0xff]
    %v1938 = vld [vmem:[#allocation8 + $0x370] sm:$0xff]
    %v1939 = vld [vmem:[#allocation8 + $0x378] sm:$0xff]
    %v1940 = vld [vmem:[#allocation8 + $0x380] sm:$0xff]
    %v1941 = vld [vmem:[#allocation8 + $0x388] sm:$0xff]
    %v1942 = vld [vmem:[#allocation8 + $0x390] sm:$0xff]
    %v1943 = vld [vmem:[#allocation8 + $0x398] sm:$0xff]
    %v1944 = vld [vmem:[#allocation8 + $0x3a0] sm:$0xff]
    %v1945 = vld [vmem:[#allocation8 + $0x3a8] sm:$0xff]
    %v1946 = vld [vmem:[#allocation8 + $0x3b0] sm:$0xff]
    %v1947 = vld [vmem:[#allocation8 + $0x3b8] sm:$0xff]
    %v1948 = vld [vmem:[#allocation8 + $0x3c0] sm:$0xff]
    %v1949 = vld [vmem:[#allocation8 + $0x3c8] sm:$0xff]
    %v1950 = vld [vmem:[#allocation8 + $0x3d0] sm:$0xff]
    %v1951 = vld [vmem:[#allocation8 + $0x3d8] sm:$0xff]
    %v1952 = vld [vmem:[#allocation8 + $0x3e0] sm:$0xff]
    %v1953 = vld [vmem:[#allocation8 + $0x3e8] sm:$0xff]
    %v1954 = vld [vmem:[#allocation8 + $0x3f0] sm:$0xff]
    %v1955 = vld [vmem:[#allocation8 + $0x3f8] sm:$0xff]
    %v1956 = vld [vmem:[#allocation8 + $0x400] sm:$0xff]
    %v1957 = vld [vmem:[#allocation8 + $0x408] sm:$0xff]
    %v1958 = vld [vmem:[#allocation8 + $0x410] sm:$0xff]
    %v1959 = vld [vmem:[#allocation8 + $0x418] sm:$0xff]
    %v1960 = vld [vmem:[#allocation8 + $0x420] sm:$0xff]
    %v1961 = vld [vmem:[#allocation8 + $0x428] sm:$0xff]
    %v1962 = vld [vmem:[#allocation8 + $0x430] sm:$0xff]
    %v1963 = vld [vmem:[#allocation8 + $0x438] sm:$0xff]
    %v1964 = vld [vmem:[#allocation8 + $0x440] sm:$0xff]
    %v1965 = vld [vmem:[#allocation8 + $0x448] sm:$0xff]
    %v1966 = vld [vmem:[#allocation8 + $0x450] sm:$0xff]
    %v1967 = vld [vmem:[#allocation8 + $0x458] sm:$0xff]
    %v1968 = vld [vmem:[#allocation8 + $0x460] sm:$0xff]
    %v1969 = vld [vmem:[#allocation8 + $0x468] sm:$0xff]
    %v1970 = vld [vmem:[#allocation8 + $0x470] sm:$0xff]
    %v1971 = vld [vmem:[#allocation8 + $0x478] sm:$0xff]
    %v1972 = vld [vmem:[#allocation10] sm:$0x7]
    %v1974 = vlaneseq
    %v1975 = vshrl.u32 %v1974, 7
    %v1976 = vsub.s32 0, %v1975
    %v1977 = vrot.slane %v1972, %v1976
    %v1978 = vlaneseq
    %v1979 = vshrl.u32 %v1978, 7
    %v1980 = vsub.s32 1, %v1979
    %v1981 = vrot.slane %v1972, %v1980
    %v1982 = vlaneseq
    %v1983 = vshrl.u32 %v1982, 7
    %v1984 = vsub.s32 2, %v1983
    %v1985 = vrot.slane %v1972, %v1984
    %1989 = vmatprep.subr.mxu0 %v1829
    %1990 = vmatpush1.msra.mxu0 %v1828
    %1991 = vmatprep.subr.mxu0 %v1832
    %1992 = vmatpush1.msra.mxu0 %v1831
    %1993 = vmatprep.subr.mxu0 %v1835
    %1994 = vmatpush1.msra.mxu0 %v1834
    %1995 = vmatprep.subr.mxu0 %v1838
    %1996 = vmatpush1.msra.mxu0 %v1837
    %1997 = vmatprep.subr.mxu0 %v1841
    %1998 = vmatpush1.msra.mxu0 %v1840
    %1999 = vmatprep.subr.mxu0 %v1844
    %2000 = vmatpush1.msra.mxu0 %v1843
    %2001 = vmatprep.subr.mxu0 %v1847
    %2002 = vmatpush1.msra.mxu0 %v1846
    %2003 = vmatprep.subr.mxu0 %v1850
    %2004 = vmatpush1.msra.mxu0 %v1849
    %2005 = vmatprep.subr.mxu0 %v1853
    %2006 = vmatpush1.msra.mxu0 %v1852
    %2007 = vmatprep.subr.mxu0 %v1856
    %2008 = vmatpush1.msra.mxu0 %v1855
    %2009 = vmatprep.subr.mxu0 %v1859
    %2010 = vmatpush1.msra.mxu0 %v1858
    %2011 = vmatprep.subr.mxu0 %v1862
    %2012 = vmatpush1.msra.mxu0 %v1861
    %2013 = vmatprep.subr.mxu0 %v1865
    %2014 = vmatpush1.msra.mxu0 %v1864
    %2015 = vmatprep.subr.mxu0 %v1868
    %2016 = vmatpush1.msra.mxu0 %v1867
    %2017 = vmatprep.subr.mxu0 %v1871
    %2018 = vmatpush1.msra.mxu0 %v1870
    %2019 = vmatprep.subr.mxu0 %v1874
    %2020 = vmatpush1.msra.mxu0 %v1873
    %2021 = vmatprep.subr.mxu0 %v1877
    %2022 = vmatpush1.msra.mxu0 %v1876
    %2023 = vmatprep.subr.mxu0 %v1880
    %2024 = vmatpush1.msra.mxu0 %v1879
    %2025 = vmatprep.subr.mxu0 %v1883
    %2026 = vmatpush1.msra.mxu0 %v1882
    %2027 = vmatprep.subr.mxu0 %v1886
    %2028 = vmatpush1.msra.mxu0 %v1885
    %2029 = vmatprep.subr.mxu0 %v1889
    %2030 = vmatpush1.msra.mxu0 %v1888
    %2031 = vmatprep.subr.mxu0 %v1892
    %2032 = vmatpush1.msra.mxu0 %v1891
    %2033 = vmatprep.subr.mxu0 %v1895
    %2034 = vmatpush1.msra.mxu0 %v1894
    %2035 = vmatprep.subr.mxu0 %v1898
    %2036 = vmatpush1.msra.mxu0 %v1897
    %2037 = vmatprep.subr.mxu0 %v1901
    %2038 = vmatpush1.msra.mxu0 %v1900
    %2039 = vmatprep.subr.mxu0 %v1904
    %2040 = vmatpush1.msra.mxu0 %v1903
    %2041 = vmatprep.subr.mxu0 %v1907
    %2042 = vmatpush1.msra.mxu0 %v1906
    %2043 = vmatprep.subr.mxu0 %v1910
    %2044 = vmatpush1.msra.mxu0 %v1909
    %2045 = vmatprep.subr.mxu0 %v1913
    %2046 = vmatpush1.msra.mxu0 %v1912
    %2047 = vmatprep.subr.mxu0 %v1916
    %2048 = vmatpush1.msra.mxu0 %v1915
    %2049 = vmatprep.subr.mxu0 %v1919
    %2050 = vmatpush1.msra.mxu0 %v1918
    %2051 = vmatprep.subr.mxu0 %v1922
    %2052 = vmatpush1.msra.mxu0 %v1921
    %2053 = vmatprep.mubr.f32.mxu0 %v1642
    %2054 = vmatmul.mubr.f32.gmra.mrb[0].mxu0 %v1464
    %v2055 = vpop.f32.mrb[0].mxu0
    %v2056 = vadd.f32 %v1977, %v2055
    %v2057 = vpop.f32.mrb[0].mxu0
    %v2058 = vadd.f32 %v1981, %v2057
    %2059 = vmatprep.mubr.f32.mxu0 %v1647
    %2060 = vmatmul.mubr.f32.gmra.mrb[0].mxu0 %v1469
    %v2061 = vpop.f32.mrb[0].mxu0
    %v2062 = vadd.f32 %v1977, %v2061
    %v2063 = vpop.f32.mrb[0].mxu0
    %v2064 = vadd.f32 %v1981, %v2063
    %2065 = vdwg.mxu0
    %2066 = vmatprep.subr.mxu0 %v1925
    %2067 = vmatpush1.msra.mxu0 %v1924
    %2068 = vmatprep.subr.mxu0 %v1928
    %2069 = vmatpush1.msra.mxu0 %v1927
    %2070 = vmatprep.subr.mxu0 %v1931
    %2071 = vmatpush1.msra.mxu0 %v1930
    %2072 = vmatprep.subr.mxu0 %v1934
    %2073 = vmatpush1.msra.mxu0 %v1933
    %2074 = vmatprep.subr.mxu0 %v1937
    %2075 = vmatpush1.msra.mxu0 %v1936
    %2076 = vmatprep.subr.mxu0 %v1940
    %2077 = vmatpush1.msra.mxu0 %v1939
    %2078 = vmatprep.subr.mxu0 %v1943
    %2079 = vmatpush1.msra.mxu0 %v1942
    %2080 = vmatprep.subr.mxu0 %v1946
    %2081 = vmatpush1.msra.mxu0 %v1945
    %2082 = vmatprep.subr.mxu0 %v1949
    %2083 = vmatpush1.msra.mxu0 %v1948
    %2084 = vmatprep.subr.mxu0 %v1952
    %2085 = vmatpush1.msra.mxu0 %v1951
    %2086 = vmatprep.subr.mxu0 %v1955
    %2087 = vmatpush1.msra.mxu0 %v1954
    %2088 = vmatprep.subr.mxu0 %v1958
    %2089 = vmatpush1.msra.mxu0 %v1957
    %2090 = vmatprep.subr.mxu0 %v1961
    %2091 = vmatpush1.msra.mxu0 %v1960
    %2092 = vmatprep.subr.mxu0 %v1964
    %2093 = vmatpush1.msra.mxu0 %v1963
    %2094 = vmatprep.subr.mxu0 %v1967
    %2095 = vmatpush1.msra.mxu0 %v1966
    %2096 = vmatprep.subr.mxu0 %v1970
    %2097 = vmatpush1.msra.mxu0 %v1969
    %2098 = vmatprep.subr.mxu0 0.0
    %2099 = vmatpush1.msra.mxu0 0.0
    %2100 = vmatprep.subr.mxu0 0.0
    %2101 = vmatpush1.msra.mxu0 0.0
    %2102 = vmatprep.subr.mxu0 0.0
    %2103 = vmatpush1.msra.mxu0 0.0
    %2104 = vmatprep.subr.mxu0 0.0
    %2105 = vmatpush1.msra.mxu0 0.0
    %2106 = vmatprep.subr.mxu0 0.0
    %2107 = vmatpush1.msra.mxu0 0.0
    %2108 = vmatprep.subr.mxu0 0.0
    %2109 = vmatpush1.msra.mxu0 0.0
    %2110 = vmatprep.subr.mxu0 0.0
    %2111 = vmatpush1.msra.mxu0 0.0
    %2112 = vmatprep.subr.mxu0 0.0
    %2113 = vmatpush1.msra.mxu0 0.0
    %2114 = vmatprep.subr.mxu0 0.0
    %2115 = vmatpush1.msra.mxu0 0.0
    %2116 = vmatprep.subr.mxu0 0.0
    %2117 = vmatpush1.msra.mxu0 0.0
    %2118 = vmatprep.subr.mxu0 0.0
    %2119 = vmatpush1.msra.mxu0 0.0
    %2120 = vmatprep.subr.mxu0 0.0
    %2121 = vmatpush1.msra.mxu0 0.0
    %2122 = vmatprep.subr.mxu0 0.0
    %2123 = vmatpush1.msra.mxu0 0.0
    %2124 = vmatprep.subr.mxu0 0.0
    %2125 = vmatpush1.msra.mxu0 0.0
    %2126 = vmatprep.subr.mxu0 0.0
    %2127 = vmatpush1.msra.mxu0 0.0
    %2128 = vmatprep.subr.mxu0 0.0
    %2129 = vmatpush1.msra.mxu0 0.0
    %2130 = vmatprep.mubr.f32.mxu0 0.0
    %2131 = vmatmul.mubr.f32.gmra.mrb[0].mxu0 %v1820
    %v2132 = vpop.f32.mrb[0].mxu0
    %v2133 = vadd.f32 %v2056, %v2132
    %v2134 = vpop.f32.mrb[0].mxu0
    %v2135 = vadd.f32 %v2058, %v2134
    %2136 = vmatprep.mubr.f32.mxu0 0.0
    %2137 = vmatmul.mubr.f32.gmra.mrb[0].mxu0 %v1825
    %v2138 = vpop.f32.mrb[0].mxu0
    %v2139 = vadd.f32 %v2062, %v2138
    %v2140 = vpop.f32.mrb[0].mxu0
    %v2141 = vadd.f32 %v2064, %v2140
    %2142 = vdwg.mxu0
    %2143 = vmatprep.subr.mxu0 0.0
    %2144 = vmatpush1.msra.mxu0 %v1830
    %2145 = vmatprep.subr.mxu0 0.0
    %2146 = vmatpush1.msra.mxu0 %v1833
    %2147 = vmatprep.subr.mxu0 0.0
    %2148 = vmatpush1.msra.mxu0 %v1836
    %2149 = vmatprep.subr.mxu0 0.0
    %2150 = vmatpush1.msra.mxu0 %v1839
    %2151 = vmatprep.subr.mxu0 0.0
    %2152 = vmatpush1.msra.mxu0 %v1842
    %2153 = vmatprep.subr.mxu0 0.0
    %2154 = vmatpush1.msra.mxu0 %v1845
    %2155 = vmatprep.subr.mxu0 0.0
    %2156 = vmatpush1.msra.mxu0 %v1848
    %2157 = vmatprep.subr.mxu0 0.0
    %2158 = vmatpush1.msra.mxu0 %v1851
    %2159 = vmatprep.subr.mxu0 0.0
    %2160 = vmatpush1.msra.mxu0 %v1854
    %2161 = vmatprep.subr.mxu0 0.0
    %2162 = vmatpush1.msra.mxu0 %v1857
    %2163 = vmatprep.subr.mxu0 0.0
    %2164 = vmatpush1.msra.mxu0 %v1860
    %2165 = vmatprep.subr.mxu0 0.0
    %2166 = vmatpush1.msra.mxu0 %v1863
    %2167 = vmatprep.subr.mxu0 0.0
    %2168 = vmatpush1.msra.mxu0 %v1866
    %2169 = vmatprep.subr.mxu0 0.0
    %2170 = vmatpush1.msra.mxu0 %v1869
    %2171 = vmatprep.subr.mxu0 0.0
    %2172 = vmatpush1.msra.mxu0 %v1872
    %2173 = vmatprep.subr.mxu0 0.0
    %2174 = vmatpush1.msra.mxu0 %v1875
    %2175 = vmatprep.subr.mxu0 0.0
    %2176 = vmatpush1.msra.mxu0 %v1878
    %2177 = vmatprep.subr.mxu0 0.0
    %2178 = vmatpush1.msra.mxu0 %v1881
    %2179 = vmatprep.subr.mxu0 0.0
    %2180 = vmatpush1.msra.mxu0 %v1884
    %2181 = vmatprep.subr.mxu0 0.0
    %2182 = vmatpush1.msra.mxu0 %v1887
    %2183 = vmatprep.subr.mxu0 0.0
    %2184 = vmatpush1.msra.mxu0 %v1890
    %2185 = vmatprep.subr.mxu0 0.0
    %2186 = vmatpush1.msra.mxu0 %v1893
    %2187 = vmatprep.subr.mxu0 0.0
    %2188 = vmatpush1.msra.mxu0 %v1896
    %2189 = vmatprep.subr.mxu0 0.0
    %2190 = vmatpush1.msra.mxu0 %v1899
    %2191 = vmatprep.subr.mxu0 0.0
    %2192 = vmatpush1.msra.mxu0 %v1902
    %2193 = vmatprep.subr.mxu0 0.0
    %2194 = vmatpush1.msra.mxu0 %v1905
    %2195 = vmatprep.subr.mxu0 0.0
    %2196 = vmatpush1.msra.mxu0 %v1908
    %2197 = vmatprep.subr.mxu0 0.0
    %2198 = vmatpush1.msra.mxu0 %v1911
    %2199 = vmatprep.subr.mxu0 0.0
    %2200 = vmatpush1.msra.mxu0 %v1914
    %2201 = vmatprep.subr.mxu0 0.0
    %2202 = vmatpush1.msra.mxu0 %v1917
    %2203 = vmatprep.subr.mxu0 0.0
    %2204 = vmatpush1.msra.mxu0 %v1920
    %2205 = vmatprep.subr.mxu0 0.0
    %2206 = vmatpush1.msra.mxu0 %v1923
    %2207 = vmatprep.mubr.f32.mxu0 %v1642
    %2208 = vmatmul.mubr.f32.gmra.mrb[0].mxu0 %v1464
    %v2209 = vpop.f32.mrb[0].mxu0
    %v2210 = vadd.f32 %v1985, %v2209
    %v2211 = vpop.f32.mrb[0].mxu0
    %2212 = vmatprep.mubr.f32.mxu0 %v1647
    %2213 = vmatmul.mubr.f32.gmra.mrb[0].mxu0 %v1469
    %v2214 = vpop.f32.mrb[0].mxu0
    %v2215 = vadd.f32 %v1985, %v2214
    %v2216 = vpop.f32.mrb[0].mxu0
    %2217 = vdwg.mxu0
    %2218 = vmatprep.subr.mxu0 0.0
    %2219 = vmatpush1.msra.mxu0 %v1926
    %2220 = vmatprep.subr.mxu0 0.0
    %2221 = vmatpush1.msra.mxu0 %v1929
    %2222 = vmatprep.subr.mxu0 0.0
    %2223 = vmatpush1.msra.mxu0 %v1932
    %2224 = vmatprep.subr.mxu0 0.0
    %2225 = vmatpush1.msra.mxu0 %v1935
    %2226 = vmatprep.subr.mxu0 0.0
    %2227 = vmatpush1.msra.mxu0 %v1938
    %2228 = vmatprep.subr.mxu0 0.0
    %2229 = vmatpush1.msra.mxu0 %v1941
    %2230 = vmatprep.subr.mxu0 0.0
    %2231 = vmatpush1.msra.mxu0 %v1944
    %2232 = vmatprep.subr.mxu0 0.0
    %2233 = vmatpush1.msra.mxu0 %v1947
    %2234 = vmatprep.subr.mxu0 0.0
    %2235 = vmatpush1.msra.mxu0 %v1950
    %2236 = vmatprep.subr.mxu0 0.0
    %2237 = vmatpush1.msra.mxu0 %v1953
    %2238 = vmatprep.subr.mxu0 0.0
    %2239 = vmatpush1.msra.mxu0 %v1956
    %2240 = vmatprep.subr.mxu0 0.0
    %2241 = vmatpush1.msra.mxu0 %v1959
    %2242 = vmatprep.subr.mxu0 0.0
    %2243 = vmatpush1.msra.mxu0 %v1962
    %2244 = vmatprep.subr.mxu0 0.0
    %2245 = vmatpush1.msra.mxu0 %v1965
    %2246 = vmatprep.subr.mxu0 0.0
    %2247 = vmatpush1.msra.mxu0 %v1968
    %2248 = vmatprep.subr.mxu0 0.0
    %2249 = vmatpush1.msra.mxu0 %v1971
    %2250 = vmatprep.subr.mxu0 0.0
    %2251 = vmatpush1.msra.mxu0 0.0
    %2252 = vmatprep.subr.mxu0 0.0
    %2253 = vmatpush1.msra.mxu0 0.0
    %2254 = vmatprep.subr.mxu0 0.0
    %2255 = vmatpush1.msra.mxu0 0.0
    %2256 = vmatprep.subr.mxu0 0.0
    %2257 = vmatpush1.msra.mxu0 0.0
    %2258 = vmatprep.subr.mxu0 0.0
    %2259 = vmatpush1.msra.mxu0 0.0
    %2260 = vmatprep.subr.mxu0 0.0
    %2261 = vmatpush1.msra.mxu0 0.0
    %2262 = vmatprep.subr.mxu0 0.0
    %2263 = vmatpush1.msra.mxu0 0.0
    %2264 = vmatprep.subr.mxu0 0.0
    %2265 = vmatpush1.msra.mxu0 0.0
    %2266 = vmatprep.subr.mxu0 0.0
    %2267 = vmatpush1.msra.mxu0 0.0
    %2268 = vmatprep.subr.mxu0 0.0
    %2269 = vmatpush1.msra.mxu0 0.0
    %2270 = vmatprep.subr.mxu0 0.0
    %2271 = vmatpush1.msra.mxu0 0.0
    %2272 = vmatprep.subr.mxu0 0.0
    %2273 = vmatpush1.msra.mxu0 0.0
    %2274 = vmatprep.subr.mxu0 0.0
    %2275 = vmatpush1.msra.mxu0 0.0
    %2276 = vmatprep.subr.mxu0 0.0
    %2277 = vmatpush1.msra.mxu0 0.0
    %2278 = vmatprep.subr.mxu0 0.0
    %2279 = vmatpush1.msra.mxu0 0.0
    %2280 = vmatprep.subr.mxu0 0.0
    %2281 = vmatpush1.msra.mxu0 0.0
    %2282 = vmatprep.mubr.f32.mxu0 0.0
    %2283 = vmatmul.mubr.f32.gmra.mrb[0].mxu0 %v1820
    %v2284 = vpop.f32.mrb[0].mxu0
    %v2285 = vadd.f32 %v2210, %v2284
    %v2286 = vpop.f32.mrb[0].mxu0
    %2287 = vmatprep.mubr.f32.mxu0 0.0
    %2288 = vmatmul.mubr.f32.gmra.mrb[0].mxu0 %v1825
    %v2289 = vpop.f32.mrb[0].mxu0
    %v2290 = vadd.f32 %v2215, %v2289
    %v2291 = vpop.f32.mrb[0].mxu0
    %2292 = vdwg.mxu0
    %2293 = vst [vmem:[#allocation11] sm:$0xff] %v2133
    %2294 = vst [vmem:[#allocation11 + $0x8] sm:$0xff] %v2135
    %2295 = vst [vmem:[#allocation11 + $0x10] sm:$0xff] %v2285
    %2296 = vst [vmem:[#allocation11 + $0x18] sm:$0xff] %v2139
    %2297 = vst [vmem:[#allocation11 + $0x20] sm:$0xff] %v2141
    %2298 = vst [vmem:[#allocation11 + $0x28] sm:$0xff] %v2290
    // Predicated region
    $region42: #{tpu_custom_call.1} parent=1 // pred_check
      _
    $region43: #{tpu_custom_call.1} parent=1 // pred_check_branch
      %2300 = sbr.rel (0) target = $region45
    $region44: #{tpu_custom_call.1} parent=1 // pred_region
      %s2302 = ssub.s32 768, 768
      %2303 = vsyncadd [#allocation4], %s2302
      %s2304 = sshll.u32 [#allocation11], 4
      %s2305 = int_to_ptr.vmem [resolvable:$true] %s2304
      %2310 = dma.vmem_to_hbm [thread:$0]  %s2305, 768, %s5, [#allocation4], 384, 384, 24
    $region45: #{tpu_custom_call.1} parent=1 // pred_fallthru
      _
    // Predicated region
    $region46: #{tpu_custom_call.1} parent=1 // pred_check
      _
    $region47: #{tpu_custom_call.1} parent=1 // pred_check_branch
      %2312 = sbr.rel (0) target = $region49
    $region48: #{tpu_custom_call.1} parent=1 // pred_region
      %2313 = dma.done [#allocation4], 768
    $region49: #{tpu_custom_call.1} parent=1 // pred_fallthru
      _
    %2314 = vsyncpa [#allocation3], 1
    %2315 = vsyncpa [#allocation6], 1
    %2316 = vsyncpa [#allocation9], 1
    %2317 = vsyncpa [#allocation4], 1

</llo_original>
